<compile_context>
chip_gen: v5e
topology: v5e:2x2
jax: 0.10.0
libtpu: 0.0.40
codegen_flags: <defaults>
</compile_context>

<pallas_src>
import math
from functools import partial

import jax
import jax.numpy as jnp
from jax import lax
from jax.experimental import pallas as pl
from jax.experimental.pallas import tpu as pltpu

LN_EPS = 1e-5


def _layer_norm(h, gamma, beta, eps):
    mu = jnp.mean(h, axis=-1, keepdims=True)
    var = jnp.mean((h - mu) ** 2, axis=-1, keepdims=True)
    return (h - mu) * lax.rsqrt(var + eps) * gamma + beta


# ----------------------------- fused kernel ---------------------------------
def _encoder_stack_kernel(x_ref, wqkv_ref, wo_ref, w1_ref, w2_ref, vec_ref,
                          o_ref, act_ref, ctx_ref, *, nhead, eps, compute_dtype):
    l = pl.program_id(1)                     # layer index (innermost grid axis)
    last = pl.num_programs(1) - 1
    bb, S, D = x_ref.shape
    FF = w1_ref.shape[2]
    R = bb * S
    hd = D // nhead
    cd = compute_dtype

    # Load the input slab into the resident f32 activation scratch once.
    @pl.when(l == 0)
    def _load_input():
        act_ref[...] = x_ref[...].reshape(R, D).astype(jnp.float32)

    # One (8, Wmax) f32 slab carries all per-layer vectors; slice rows.
    vecs = vec_ref[0]
    bqkv = vecs[0:1, :3 * D]
    bo = vecs[1:2, :D]
    b1 = vecs[2:3, :FF]
    b2 = vecs[3:4, :D]
    g1, be1 = vecs[4:5, :D], vecs[5:6, :D]
    g2, be2 = vecs[6:7, :D], vecs[7:8, :D]

    x = act_ref[...]                         # (R, D) f32 residual stream
    xc = x.astype(cd)

    # ---- self-attention: fused QKV projection on the flattened slab ----
    qkv = jnp.dot(xc, wqkv_ref[0], preferred_element_type=jnp.float32) + bqkv
    # 1/sqrt(hd) is already folded into the Q columns of wqkv_t / bqkv.
    q = qkv[:, :D].reshape(bb, S, D)
    k = qkv[:, D:2 * D].reshape(bb, S, D)
    v = qkv[:, 2 * D:].reshape(bb, S, D)

    # Per-head attention.  The loop stays statically unrolled so every head /
    # lane offset is static (Mosaic-safe slices & scratch stores); each head's
    # context slice lands at its lane offset in ctx_ref so the out-projection
    # below is a single full-K MXU matmul.
    for h in range(nhead):
        sl = slice(h * hd, (h + 1) * hd)
        qh = q[:, :, sl].astype(cd)
        kh = k[:, :, sl].astype(cd)
        vh = v[:, :, sl].astype(cd)
        s = jnp.einsum("bqd,bkd->bqk", qh, kh,
                       preferred_element_type=jnp.float32)      # (bb, S, S)
        s = s - jnp.max(s, axis=-1, keepdims=True)
        p = jnp.exp(s)
        # approx reciprocal (EUP slot); rows sum to 1 only to ~1e-3 — fine at
        # the bf16-weight accuracy level of this kernel.
        p = p * pl.reciprocal(jnp.sum(p, axis=-1, keepdims=True), approx=True)
        pv = jnp.einsum("bqk,bkd->bqd", p.astype(cd), vh,
                        preferred_element_type=jnp.float32)      # (bb, S, hd)
        ctx_ref[:, sl] = pv.reshape(R, hd).astype(cd)

    # Single (R, D) @ (D, D) out-projection (full-K MXU tile).
    attn = jnp.dot(ctx_ref[...], wo_ref[0],
                   preferred_element_type=jnp.float32) + bo

    # ---- add & norm 1 (PyTorch default post-norm) ----
    h1 = _layer_norm(x + attn, g1, be1, eps)

    # ---- feed-forward (ReLU) ----
    f = jnp.dot(h1.astype(cd), w1_ref[0], preferred_element_type=jnp.float32)
    f = jnp.maximum(f + b1, 0.0)
    f = jnp.dot(f.astype(cd), w2_ref[0], preferred_element_type=jnp.float32) + b2

    # ---- add & norm 2 ----
    h2 = _layer_norm(h1 + f, g2, be2, eps)

    @pl.when(l != last)
    def _carry():
        act_ref[...] = h2                    # carry to next layer (stays in VMEM)

    @pl.when(l == last)
    def _store():
        # Output block index is constant over the layer axis -> single HBM
        # writeback; guarding also skips L-1 redundant VMEM store passes.
        o_ref[...] = h2.reshape(bb, S, D).astype(o_ref.dtype)


# ------------------------------- wrapper -------------------------------------
def pack_layer_params(layer_params, *, nhead, compute_dtype=jnp.bfloat16):
    """Done ONCE at init (hoisted out of the forward path): transpose the
    PyTorch (out, in) weights so the kernel computes x @ W^T directly, fold the
    1/sqrt(head_dim) attention scale into the Q rows of wqkv/bqkv, cast matmul
    weights to the MXU compute dtype, pack all small per-layer vectors into one
    (8, Wmax) slab, and stack everything along a leading layer axis."""
    if not layer_params:
        return None
    f32 = jnp.float32
    D = layer_params[0]["wo"].shape[0]
    FF = layer_params[0]["w1"].shape[0]
    assert D % nhead == 0, "d_model must be divisible by nhead"
    scale = 1.0 / math.sqrt(D // nhead)
    Wmax = max(3 * D, FF)

    def one_layer(p):
        wqkv = p["wqkv"].astype(f32).at[:D, :].multiply(scale)   # scale Q rows
        bqkv = p["bqkv"].astype(f32).at[:D].multiply(scale)
        rows = [bqkv, p["bo"], p["b1"], p["b2"],
                p["g1"], p["be1"], p["g2"], p["be2"]]
        vecs = jnp.stack([jnp.pad(r.astype(f32), (0, Wmax - r.shape[0]))
                          for r in rows])                         # (8, Wmax)
        return (wqkv.T.astype(compute_dtype),                    # (D, 3D)
                p["wo"].astype(f32).T.astype(compute_dtype),     # (D, D)
                p["w1"].astype(f32).T.astype(compute_dtype),     # (D, FF)
                p["w2"].astype(f32).T.astype(compute_dtype),     # (FF, D)
                vecs)

    per = [one_layer(p) for p in layer_params]
    stack = lambda i: jnp.stack([t[i] for t in per])
    return dict(wqkv_t=stack(0), wo_t=stack(1), w1_t=stack(2),
                w2_t=stack(3), vecs=stack(4))


def _num_batch_blocks(B, S):
    """Megacore split only on multi-TC chips (v7x) and only when each block
    still keeps the MXU M-dim tall; on single-TC v5e/v6e a second batch block
    just doubles the per-layer weight DMA."""
    if B < 2 or B % 2 != 0:
        return 1
    if (B // 2) * S < 256:
        return 1
    try:
        kind = jax.devices()[0].device_kind.lower()
    except Exception:
        return 1
    return 2 if "7" in kind else 1


def _vmem_limit_bytes():
    """Request most of (but not all) physical VMEM — leave compiler headroom.
    ~48 MiB on v7x (64 MiB physical), ~112 MiB on v5e/v6e (128 MiB)."""
    try:
        cap = int(pltpu.get_tpu_info().vmem_capacity_bytes)
    except Exception:
        cap = 64 * 1024 * 1024
    return max(32 * 1024 * 1024, min(cap - 16 * 1024 * 1024, 112 * 1024 * 1024))


def encoder_stack_pallas(x, packed, *, nhead, eps=LN_EPS):
    B, S, D = x.shape
    L, _, FF = packed["w1_t"].shape
    compute_dtype = packed["wqkv_t"].dtype
    hd = D // nhead

    nb = _num_batch_blocks(B, S)
    bb = B // nb

    act_map = lambda b, l: (b, 0, 0)
    layer_map = lambda b, l: (l, 0, 0)
    w_spec = lambda a: pl.BlockSpec((1,) + a.shape[1:], layer_map)

    in_specs = [
        pl.BlockSpec((bb, S, D), act_map),                          # x
        w_spec(packed["wqkv_t"]), w_spec(packed["wo_t"]),
        w_spec(packed["w1_t"]), w_spec(packed["w2_t"]),
        w_spec(packed["vecs"]),
    ]

    grid_spec = pltpu.PrefetchScalarGridSpec(
        num_scalar_prefetch=0,
        grid=(nb, L),                                    # layers innermost
        in_specs=in_specs,
        out_specs=pl.BlockSpec((bb, S, D), act_map),
        scratch_shapes=[pltpu.VMEM((bb * S, D), jnp.float32),     # resident acts
                        pltpu.VMEM((bb * S, D), compute_dtype)],  # attn context
    )

    kernel = partial(_encoder_stack_kernel, nhead=nhead, eps=eps,
                     compute_dtype=compute_dtype)

    # Advisory cost hint for the XLA scheduler around the fused call.
    flops = int(2 * B * S * L * (4 * D * D + 2 * D * FF)
                + 4 * B * L * nhead * S * S * hd)
    transcendentals = int(B * L * nhead * S * S)
    weight_bytes = sum(int(packed[k].size) * packed[k].dtype.itemsize
                       for k in ("wqkv_t", "wo_t", "w1_t", "w2_t", "vecs"))
    bytes_accessed = int(nb * weight_bytes + 2 * B * S * D * x.dtype.itemsize)

    return pl.pallas_call(
        kernel,
        out_shape=jax.ShapeDtypeStruct((B, S, D), x.dtype),
        grid_spec=grid_spec,
        compiler_params=pltpu.CompilerParams(
            dimension_semantics=("parallel", "arbitrary"),
            vmem_limit_bytes=_vmem_limit_bytes()),
        cost_estimate=pl.CostEstimate(flops=flops,
                                      transcendentals=transcendentals,
                                      bytes_accessed=bytes_accessed),
    )(x, packed["wqkv_t"], packed["wo_t"], packed["w1_t"], packed["w2_t"],
      packed["vecs"])


def transformer_projector(encoding, packed, *, nhead, enc_mask=None):
    """Equivalent of TransformerProjector.forward (enc_mask=None only).

    The PyTorch module permutes to (S, B, D) only because nn.Transformer is
    seq-first by default; the per-token math is identical, so we keep (B,S,D)."""
    assert enc_mask is None, "enc_mask path not implemented"
    if packed is None:          # num_layer == 0 -> identity, as in PyTorch
        return encoding
    return encoder_stack_pallas(encoding, packed, nhead=nhead)


# ------------------------- pure-JAX reference --------------------------------
def _ref_layer(x, p, *, nhead, eps=LN_EPS):
    B, S, D = x.shape
    hd = D // nhead
    qkv = x @ p["wqkv"].T + p["bqkv"]
    q, k, v = qkv[..., :D], qkv[..., D:2 * D], qkv[..., 2 * D:]
    split = lambda t: t.reshape(B, S, nhead, hd).transpose(0, 2, 1, 3)
    q, k, v = split(q), split(k), split(v)
    s = jnp.einsum("bhqd,bhkd->bhqk", q, k) / math.sqrt(hd)
    a = jnp.einsum("bhqk,bhkd->bhqd", jax.nn.softmax(s, axis=-1), v)
    a = a.transpose(0, 2, 1, 3).reshape(B, S, D) @ p["wo"].T + p["bo"]
    h1 = _layer_norm(x + a, p["g1"], p["be1"], eps)
    f = jnp.maximum(h1 @ p["w1"].T + p["b1"], 0.0) @ p["w2"].T + p["b2"]
    return _layer_norm(h1 + f, p["g2"], p["be2"], eps)


def _ref_forward(x, layer_params, *, nhead):
    for p in layer_params:
        x = _ref_layer(x, p, nhead=nhead)
    return x


# ------------------------------ params ---------------------------------------
def init_layer_params(key, d_model, dim_feedforward):
    ks = jax.random.split(key, 8)
    n = lambda k, shape: 0.05 * jax.random.normal(k, shape, jnp.float32)
    return dict(
        wqkv=n(ks[0], (3 * d_model, d_model)), bqkv=n(ks[1], (3 * d_model,)),
        wo=n(ks[2], (d_model, d_model)),       bo=n(ks[3], (d_model,)),
        w1=n(ks[4], (dim_feedforward, d_model)), b1=n(ks[5], (dim_feedforward,)),
        w2=n(ks[6], (d_model, dim_feedforward)), b2=n(ks[7], (d_model,)),
        g1=jnp.ones((d_model,), jnp.float32), be1=jnp.zeros((d_model,), jnp.float32),
        g2=jnp.ones((d_model,), jnp.float32), be2=jnp.zeros((d_model,), jnp.float32),
    )


if __name__ == "__main__":
    B, S, D = 2, 8, 32          # batch, seq, d_model
    NHEAD, FF, NUM_LAYER = 8, 64, 2

    key = jax.random.PRNGKey(0)
    kx, *kls = jax.random.split(key, NUM_LAYER + 1)
    encoding = jax.random.normal(kx, (B, S, D), jnp.float32)
    layer_params = [init_layer_params(kls[i], D, FF) for i in range(NUM_LAYER)]

    # One-time packing (transpose / scale-fold / bf16-cast / stack) — not in
    # the forward path.
    packed = pack_layer_params(layer_params, nhead=NHEAD,
                               compute_dtype=jnp.bfloat16)

    fwd = jax.jit(partial(transformer_projector, nhead=NHEAD))
    out = fwd(encoding, packed)
    out = jax.block_until_ready(out)

    ref = _ref_forward(encoding, layer_params, nhead=NHEAD)
    assert out.shape == (B, S, D)
    max_err = float(jnp.max(jnp.abs(out - ref)))
    assert jnp.allclose(out, ref, atol=3e-2, rtol=3e-2), \
        f"mismatch vs reference, max|diff|={max_err}"

    print("KERNEL_OK")
</pallas_src>

<mosaic_0001>
module attributes {stable_mosaic.version = 11 : i64} {
  func.func @_encoder_stack_kernel(%arg0: i32, %arg1: i32, %arg2: memref<2x8x32xf32, #tpu.memory_space<vmem>>, %arg3: memref<1x32x96xbf16, #tpu.memory_space<vmem>>, %arg4: memref<1x32x32xbf16, #tpu.memory_space<vmem>>, %arg5: memref<1x32x64xbf16, #tpu.memory_space<vmem>>, %arg6: memref<1x64x32xbf16, #tpu.memory_space<vmem>>, %arg7: memref<1x8x96xf32, #tpu.memory_space<vmem>>, %arg8: memref<2x8x32xf32, #tpu.memory_space<vmem>>, %arg9: memref<16x32xf32, #tpu.memory_space<vmem>>, %arg10: memref<16x32xbf16, #tpu.memory_space<vmem>>) attributes {dimension_semantics = [#tpu.dimension_semantics<parallel>, #tpu.dimension_semantics<arbitrary>], iteration_bounds = array<i64: 1, 2>, scalar_prefetch = 0 : i64, scratch_operands = 2 : i64, tpu.core_type = #tpu.core_type<tc>, window_params = [{transform_indices = @transform_0, window_bounds = array<i64: 2, 8, 32>}, {transform_indices = @transform_1, window_bounds = array<i64: 1, 32, 96>}, {transform_indices = @transform_2, window_bounds = array<i64: 1, 32, 32>}, {transform_indices = @transform_3, window_bounds = array<i64: 1, 32, 64>}, {transform_indices = @transform_4, window_bounds = array<i64: 1, 64, 32>}, {transform_indices = @transform_5, window_bounds = array<i64: 1, 8, 96>}, {transform_indices = @transform_6, window_bounds = array<i64: 2, 8, 32>}]} {
    %c0_i32 = arith.constant 0 : i32
    %0 = arith.cmpi eq, %arg1, %c0_i32 : i32
    %1 = arith.extui %0 : i1 to i32
    %c0_i32_0 = arith.constant 0 : i32
    %2 = arith.cmpi ne, %1, %c0_i32_0 : i32
    scf.if %2 {
      %c0_77 = arith.constant 0 : index
      %c0_78 = arith.constant 0 : index
      %c0_79 = arith.constant 0 : index
      %274 = vector.load %arg2[%c0_77, %c0_78, %c0_79] : memref<2x8x32xf32, #tpu.memory_space<vmem>>, vector<2x8x32xf32>
      %275 = vector.shape_cast %274 : vector<2x8x32xf32> to vector<16x32xf32>
      %c0_80 = arith.constant 0 : index
      %c0_81 = arith.constant 0 : index
      %276 = vector.load %arg9[%c0_80, %c0_81] : memref<16x32xf32, #tpu.memory_space<vmem>>, vector<16x32xf32>
      tpu.vector_store %arg9[%c0_80, %c0_81], %275 {strides = array<i32>} : memref<16x32xf32, #tpu.memory_space<vmem>>, vector<16x32xf32>,
    } else {
    }
    %c0 = arith.constant 0 : index
    %c0_1 = arith.constant 0 : index
    %c0_2 = arith.constant 0 : index
    %3 = vector.load %arg7[%c0, %c0_1, %c0_2] : memref<1x8x96xf32, #tpu.memory_space<vmem>>, vector<1x8x96xf32>
    %4 = vector.shape_cast %3 : vector<1x8x96xf32> to vector<8x96xf32>
    %5 = vector.extract_strided_slice %4 {offsets = [0, 0], sizes = [1, 96], strides = [1, 1]} : vector<8x96xf32> to vector<1x96xf32>
    %6 = vector.extract_strided_slice %4 {offsets = [1, 0], sizes = [1, 32], strides = [1, 1]} : vector<8x96xf32> to vector<1x32xf32>
    %7 = vector.extract_strided_slice %4 {offsets = [2, 0], sizes = [1, 64], strides = [1, 1]} : vector<8x96xf32> to vector<1x64xf32>
    %8 = vector.extract_strided_slice %4 {offsets = [3, 0], sizes = [1, 32], strides = [1, 1]} : vector<8x96xf32> to vector<1x32xf32>
    %9 = vector.extract_strided_slice %4 {offsets = [4, 0], sizes = [1, 32], strides = [1, 1]} : vector<8x96xf32> to vector<1x32xf32>
    %10 = vector.extract_strided_slice %4 {offsets = [5, 0], sizes = [1, 32], strides = [1, 1]} : vector<8x96xf32> to vector<1x32xf32>
    %11 = vector.extract_strided_slice %4 {offsets = [6, 0], sizes = [1, 32], strides = [1, 1]} : vector<8x96xf32> to vector<1x32xf32>
    %12 = vector.extract_strided_slice %4 {offsets = [7, 0], sizes = [1, 32], strides = [1, 1]} : vector<8x96xf32> to vector<1x32xf32>
    %c0_3 = arith.constant 0 : index
    %c0_4 = arith.constant 0 : index
    %13 = vector.load %arg9[%c0_3, %c0_4] : memref<16x32xf32, #tpu.memory_space<vmem>>, vector<16x32xf32>
    %14 = arith.truncf %13 : vector<16x32xf32> to vector<16x32xbf16>
    %c0_5 = arith.constant 0 : index
    %c0_6 = arith.constant 0 : index
    %c0_7 = arith.constant 0 : index
    %15 = vector.load %arg3[%c0_5, %c0_6, %c0_7] : memref<1x32x96xbf16, #tpu.memory_space<vmem>>, vector<1x32x96xbf16>
    %16 = vector.shape_cast %15 : vector<1x32x96xbf16> to vector<32x96xbf16>
    %cst = arith.constant dense<0.000000e+00> : vector<16x96xf32>
    %17 = tpu.matmul %14, %16, %cst {dimension_numbers = #tpu.dot_dimension_numbers<[1], [0], [0], [1], [0, 0, 1, 1], [], []>} : vector<16x32xbf16>, vector<32x96xbf16>, vector<16x96xf32> -> vector<16x96xf32>
    %18 = vector.broadcast %5 : vector<1x96xf32> to vector<16x96xf32>
    %19 = arith.addf %17, %18 : vector<16x96xf32>
    %20 = vector.extract_strided_slice %19 {offsets = [0, 0], sizes = [16, 32], strides = [1, 1]} : vector<16x96xf32> to vector<16x32xf32>
    %21 = vector.shape_cast %20 : vector<16x32xf32> to vector<2x8x32xf32>
    %22 = vector.extract_strided_slice %19 {offsets = [0, 32], sizes = [16, 32], strides = [1, 1]} : vector<16x96xf32> to vector<16x32xf32>
    %23 = vector.shape_cast %22 : vector<16x32xf32> to vector<2x8x32xf32>
    %24 = vector.extract_strided_slice %19 {offsets = [0, 64], sizes = [16, 32], strides = [1, 1]} : vector<16x96xf32> to vector<16x32xf32>
    %25 = vector.shape_cast %24 : vector<16x32xf32> to vector<2x8x32xf32>
    %26 = vector.extract_strided_slice %21 {offsets = [0, 0, 0], sizes = [2, 8, 4], strides = [1, 1, 1]} : vector<2x8x32xf32> to vector<2x8x4xf32>
    %27 = arith.truncf %26 : vector<2x8x4xf32> to vector<2x8x4xbf16>
    %28 = vector.extract_strided_slice %23 {offsets = [0, 0, 0], sizes = [2, 8, 4], strides = [1, 1, 1]} : vector<2x8x32xf32> to vector<2x8x4xf32>
    %29 = arith.truncf %28 : vector<2x8x4xf32> to vector<2x8x4xbf16>
    %30 = vector.extract_strided_slice %25 {offsets = [0, 0, 0], sizes = [2, 8, 4], strides = [1, 1, 1]} : vector<2x8x32xf32> to vector<2x8x4xf32>
    %31 = arith.truncf %30 : vector<2x8x4xf32> to vector<2x8x4xbf16>
    "tpu.trace_start"() <{level = 10 : i32, message = "bqd,bkd->bqk"}> : () -> ()
    %cst_8 = arith.constant dense<0.000000e+00> : vector<2x8x8xf32>
    %32 = tpu.matmul %27, %29, %cst_8 {dimension_numbers = #tpu.dot_dimension_numbers<[2], [2], [1], [1], [0, 0, 0, 1, 1, 1], [0], [0]>} : vector<2x8x4xbf16>, vector<2x8x4xbf16>, vector<2x8x8xf32> -> vector<2x8x8xf32>
    "tpu.trace_stop"() : () -> ()
    %cst_9 = arith.constant dense<0xFF800000> : vector<2x8xf32>
    %33 = vector.multi_reduction <maximumf>, %32, %cst_9 [2] : vector<2x8x8xf32> to vector<2x8xf32>
    %34 = vector.shape_cast %33 : vector<2x8xf32> to vector<2x8x1xf32>
    %35 = vector.broadcast %34 : vector<2x8x1xf32> to vector<2x8x8xf32>
    %36 = arith.subf %32, %35 : vector<2x8x8xf32>
    %37 = math.exp %36 : vector<2x8x8xf32>
    %cst_10 = arith.constant dense<0.000000e+00> : vector<2x8xf32>
    %38 = vector.multi_reduction <add>, %37, %cst_10 [2] : vector<2x8x8xf32> to vector<2x8xf32>
    %39 = vector.shape_cast %38 : vector<2x8xf32> to vector<2x8x1xf32>
    %40 = tpu.reciprocal %39 {approx = true} : vector<2x8x1xf32> -> vector<2x8x1xf32>
    %41 = vector.broadcast %40 : vector<2x8x1xf32> to vector<2x8x8xf32>
    %42 = arith.mulf %37, %41 : vector<2x8x8xf32>
    %43 = arith.truncf %42 : vector<2x8x8xf32> to vector<2x8x8xbf16>
    "tpu.trace_start"() <{level = 10 : i32, message = "bqk,bkd->bqd"}> : () -> ()
    %cst_11 = arith.constant dense<0.000000e+00> : vector<2x8x4xf32>
    %44 = tpu.matmul %43, %31, %cst_11 {dimension_numbers = #tpu.dot_dimension_numbers<[2], [1], [1], [2], [0, 0, 0, 1, 1, 2], [0], [0]>} : vector<2x8x8xbf16>, vector<2x8x4xbf16>, vector<2x8x4xf32> -> vector<2x8x4xf32>
    "tpu.trace_stop"() : () -> ()
    %45 = vector.shape_cast %44 : vector<2x8x4xf32> to vector<16x4xf32>
    %46 = arith.truncf %45 : vector<16x4xf32> to vector<16x4xbf16>
    %c0_12 = arith.constant 0 : index
    %c0_13 = arith.constant 0 : index
    %47 = vector.load %arg10[%c0_12, %c0_13] : memref<16x32xbf16, #tpu.memory_space<vmem>>, vector<16x4xbf16>
    tpu.vector_store %arg10[%c0_12, %c0_13], %46 {strides = array<i32>} : memref<16x32xbf16, #tpu.memory_space<vmem>>, vector<16x4xbf16>,
    %48 = vector.extract_strided_slice %21 {offsets = [0, 0, 4], sizes = [2, 8, 4], strides = [1, 1, 1]} : vector<2x8x32xf32> to vector<2x8x4xf32>
    %49 = arith.truncf %48 : vector<2x8x4xf32> to vector<2x8x4xbf16>
    %50 = vector.extract_strided_slice %23 {offsets = [0, 0, 4], sizes = [2, 8, 4], strides = [1, 1, 1]} : vector<2x8x32xf32> to vector<2x8x4xf32>
    %51 = arith.truncf %50 : vector<2x8x4xf32> to vector<2x8x4xbf16>
    %52 = vector.extract_strided_slice %25 {offsets = [0, 0, 4], sizes = [2, 8, 4], strides = [1, 1, 1]} : vector<2x8x32xf32> to vector<2x8x4xf32>
    %53 = arith.truncf %52 : vector<2x8x4xf32> to vector<2x8x4xbf16>
    "tpu.trace_start"() <{level = 10 : i32, message = "bqd,bkd->bqk"}> : () -> ()
    %cst_14 = arith.constant dense<0.000000e+00> : vector<2x8x8xf32>
    %54 = tpu.matmul %49, %51, %cst_14 {dimension_numbers = #tpu.dot_dimension_numbers<[2], [2], [1], [1], [0, 0, 0, 1, 1, 1], [0], [0]>} : vector<2x8x4xbf16>, vector<2x8x4xbf16>, vector<2x8x8xf32> -> vector<2x8x8xf32>
    "tpu.trace_stop"() : () -> ()
    %cst_15 = arith.constant dense<0xFF800000> : vector<2x8xf32>
    %55 = vector.multi_reduction <maximumf>, %54, %cst_15 [2] : vector<2x8x8xf32> to vector<2x8xf32>
    %56 = vector.shape_cast %55 : vector<2x8xf32> to vector<2x8x1xf32>
    %57 = vector.broadcast %56 : vector<2x8x1xf32> to vector<2x8x8xf32>
    %58 = arith.subf %54, %57 : vector<2x8x8xf32>
    %59 = math.exp %58 : vector<2x8x8xf32>
    %cst_16 = arith.constant dense<0.000000e+00> : vector<2x8xf32>
    %60 = vector.multi_reduction <add>, %59, %cst_16 [2] : vector<2x8x8xf32> to vector<2x8xf32>
    %61 = vector.shape_cast %60 : vector<2x8xf32> to vector<2x8x1xf32>
    %62 = tpu.reciprocal %61 {approx = true} : vector<2x8x1xf32> -> vector<2x8x1xf32>
    %63 = vector.broadcast %62 : vector<2x8x1xf32> to vector<2x8x8xf32>
    %64 = arith.mulf %59, %63 : vector<2x8x8xf32>
    %65 = arith.truncf %64 : vector<2x8x8xf32> to vector<2x8x8xbf16>
    "tpu.trace_start"() <{level = 10 : i32, message = "bqk,bkd->bqd"}> : () -> ()
    %cst_17 = arith.constant dense<0.000000e+00> : vector<2x8x4xf32>
    %66 = tpu.matmul %65, %53, %cst_17 {dimension_numbers = #tpu.dot_dimension_numbers<[2], [1], [1], [2], [0, 0, 0, 1, 1, 2], [0], [0]>} : vector<2x8x8xbf16>, vector<2x8x4xbf16>, vector<2x8x4xf32> -> vector<2x8x4xf32>
    "tpu.trace_stop"() : () -> ()
    %67 = vector.shape_cast %66 : vector<2x8x4xf32> to vector<16x4xf32>
    %68 = arith.truncf %67 : vector<16x4xf32> to vector<16x4xbf16>
    %c0_18 = arith.constant 0 : index
    %c4 = arith.constant 4 : index
    %69 = vector.load %arg10[%c0_18, %c4] : memref<16x32xbf16, #tpu.memory_space<vmem>>, vector<16x4xbf16>
    tpu.vector_store %arg10[%c0_18, %c4], %68 {strides = array<i32>} : memref<16x32xbf16, #tpu.memory_space<vmem>>, vector<16x4xbf16>,
    %70 = vector.extract_strided_slice %21 {offsets = [0, 0, 8], sizes = [2, 8, 4], strides = [1, 1, 1]} : vector<2x8x32xf32> to vector<2x8x4xf32>
    %71 = arith.truncf %70 : vector<2x8x4xf32> to vector<2x8x4xbf16>
    %72 = vector.extract_strided_slice %23 {offsets = [0, 0, 8], sizes = [2, 8, 4], strides = [1, 1, 1]} : vector<2x8x32xf32> to vector<2x8x4xf32>
    %73 = arith.truncf %72 : vector<2x8x4xf32> to vector<2x8x4xbf16>
    %74 = vector.extract_strided_slice %25 {offsets = [0, 0, 8], sizes = [2, 8, 4], strides = [1, 1, 1]} : vector<2x8x32xf32> to vector<2x8x4xf32>
    %75 = arith.truncf %74 : vector<2x8x4xf32> to vector<2x8x4xbf16>
    "tpu.trace_start"() <{level = 10 : i32, message = "bqd,bkd->bqk"}> : () -> ()
    %cst_19 = arith.constant dense<0.000000e+00> : vector<2x8x8xf32>
    %76 = tpu.matmul %71, %73, %cst_19 {dimension_numbers = #tpu.dot_dimension_numbers<[2], [2], [1], [1], [0, 0, 0, 1, 1, 1], [0], [0]>} : vector<2x8x4xbf16>, vector<2x8x4xbf16>, vector<2x8x8xf32> -> vector<2x8x8xf32>
    "tpu.trace_stop"() : () -> ()
    %cst_20 = arith.constant dense<0xFF800000> : vector<2x8xf32>
    %77 = vector.multi_reduction <maximumf>, %76, %cst_20 [2] : vector<2x8x8xf32> to vector<2x8xf32>
    %78 = vector.shape_cast %77 : vector<2x8xf32> to vector<2x8x1xf32>
    %79 = vector.broadcast %78 : vector<2x8x1xf32> to vector<2x8x8xf32>
    %80 = arith.subf %76, %79 : vector<2x8x8xf32>
    %81 = math.exp %80 : vector<2x8x8xf32>
    %cst_21 = arith.constant dense<0.000000e+00> : vector<2x8xf32>
    %82 = vector.multi_reduction <add>, %81, %cst_21 [2] : vector<2x8x8xf32> to vector<2x8xf32>
    %83 = vector.shape_cast %82 : vector<2x8xf32> to vector<2x8x1xf32>
    %84 = tpu.reciprocal %83 {approx = true} : vector<2x8x1xf32> -> vector<2x8x1xf32>
    %85 = vector.broadcast %84 : vector<2x8x1xf32> to vector<2x8x8xf32>
    %86 = arith.mulf %81, %85 : vector<2x8x8xf32>
    %87 = arith.truncf %86 : vector<2x8x8xf32> to vector<2x8x8xbf16>
    "tpu.trace_start"() <{level = 10 : i32, message = "bqk,bkd->bqd"}> : () -> ()
    %cst_22 = arith.constant dense<0.000000e+00> : vector<2x8x4xf32>
    %88 = tpu.matmul %87, %75, %cst_22 {dimension_numbers = #tpu.dot_dimension_numbers<[2], [1], [1], [2], [0, 0, 0, 1, 1, 2], [0], [0]>} : vector<2x8x8xbf16>, vector<2x8x4xbf16>, vector<2x8x4xf32> -> vector<2x8x4xf32>
    "tpu.trace_stop"() : () -> ()
    %89 = vector.shape_cast %88 : vector<2x8x4xf32> to vector<16x4xf32>
    %90 = arith.truncf %89 : vector<16x4xf32> to vector<16x4xbf16>
    %c0_23 = arith.constant 0 : index
    %c8 = arith.constant 8 : index
    %91 = vector.load %arg10[%c0_23, %c8] : memref<16x32xbf16, #tpu.memory_space<vmem>>, vector<16x4xbf16>
    tpu.vector_store %arg10[%c0_23, %c8], %90 {strides = array<i32>} : memref<16x32xbf16, #tpu.memory_space<vmem>>, vector<16x4xbf16>,
    %92 = vector.extract_strided_slice %21 {offsets = [0, 0, 12], sizes = [2, 8, 4], strides = [1, 1, 1]} : vector<2x8x32xf32> to vector<2x8x4xf32>
    %93 = arith.truncf %92 : vector<2x8x4xf32> to vector<2x8x4xbf16>
    %94 = vector.extract_strided_slice %23 {offsets = [0, 0, 12], sizes = [2, 8, 4], strides = [1, 1, 1]} : vector<2x8x32xf32> to vector<2x8x4xf32>
    %95 = arith.truncf %94 : vector<2x8x4xf32> to vector<2x8x4xbf16>
    %96 = vector.extract_strided_slice %25 {offsets = [0, 0, 12], sizes = [2, 8, 4], strides = [1, 1, 1]} : vector<2x8x32xf32> to vector<2x8x4xf32>
    %97 = arith.truncf %96 : vector<2x8x4xf32> to vector<2x8x4xbf16>
    "tpu.trace_start"() <{level = 10 : i32, message = "bqd,bkd->bqk"}> : () -> ()
    %cst_24 = arith.constant dense<0.000000e+00> : vector<2x8x8xf32>
    %98 = tpu.matmul %93, %95, %cst_24 {dimension_numbers = #tpu.dot_dimension_numbers<[2], [2], [1], [1], [0, 0, 0, 1, 1, 1], [0], [0]>} : vector<2x8x4xbf16>, vector<2x8x4xbf16>, vector<2x8x8xf32> -> vector<2x8x8xf32>
    "tpu.trace_stop"() : () -> ()
    %cst_25 = arith.constant dense<0xFF800000> : vector<2x8xf32>
    %99 = vector.multi_reduction <maximumf>, %98, %cst_25 [2] : vector<2x8x8xf32> to vector<2x8xf32>
    %100 = vector.shape_cast %99 : vector<2x8xf32> to vector<2x8x1xf32>
    %101 = vector.broadcast %100 : vector<2x8x1xf32> to vector<2x8x8xf32>
    %102 = arith.subf %98, %101 : vector<2x8x8xf32>
    %103 = math.exp %102 : vector<2x8x8xf32>
    %cst_26 = arith.constant dense<0.000000e+00> : vector<2x8xf32>
    %104 = vector.multi_reduction <add>, %103, %cst_26 [2] : vector<2x8x8xf32> to vector<2x8xf32>
    %105 = vector.shape_cast %104 : vector<2x8xf32> to vector<2x8x1xf32>
    %106 = tpu.reciprocal %105 {approx = true} : vector<2x8x1xf32> -> vector<2x8x1xf32>
    %107 = vector.broadcast %106 : vector<2x8x1xf32> to vector<2x8x8xf32>
    %108 = arith.mulf %103, %107 : vector<2x8x8xf32>
    %109 = arith.truncf %108 : vector<2x8x8xf32> to vector<2x8x8xbf16>
    "tpu.trace_start"() <{level = 10 : i32, message = "bqk,bkd->bqd"}> : () -> ()
    %cst_27 = arith.constant dense<0.000000e+00> : vector<2x8x4xf32>
    %110 = tpu.matmul %109, %97, %cst_27 {dimension_numbers = #tpu.dot_dimension_numbers<[2], [1], [1], [2], [0, 0, 0, 1, 1, 2], [0], [0]>} : vector<2x8x8xbf16>, vector<2x8x4xbf16>, vector<2x8x4xf32> -> vector<2x8x4xf32>
    "tpu.trace_stop"() : () -> ()
    %111 = vector.shape_cast %110 : vector<2x8x4xf32> to vector<16x4xf32>
    %112 = arith.truncf %111 : vector<16x4xf32> to vector<16x4xbf16>
    %c0_28 = arith.constant 0 : index
    %c12 = arith.constant 12 : index
    %113 = vector.load %arg10[%c0_28, %c12] : memref<16x32xbf16, #tpu.memory_space<vmem>>, vector<16x4xbf16>
    tpu.vector_store %arg10[%c0_28, %c12], %112 {strides = array<i32>} : memref<16x32xbf16, #tpu.memory_space<vmem>>, vector<16x4xbf16>,
    %114 = vector.extract_strided_slice %21 {offsets = [0, 0, 16], sizes = [2, 8, 4], strides = [1, 1, 1]} : vector<2x8x32xf32> to vector<2x8x4xf32>
    %115 = arith.truncf %114 : vector<2x8x4xf32> to vector<2x8x4xbf16>
    %116 = vector.extract_strided_slice %23 {offsets = [0, 0, 16], sizes = [2, 8, 4], strides = [1, 1, 1]} : vector<2x8x32xf32> to vector<2x8x4xf32>
    %117 = arith.truncf %116 : vector<2x8x4xf32> to vector<2x8x4xbf16>
    %118 = vector.extract_strided_slice %25 {offsets = [0, 0, 16], sizes = [2, 8, 4], strides = [1, 1, 1]} : vector<2x8x32xf32> to vector<2x8x4xf32>
    %119 = arith.truncf %118 : vector<2x8x4xf32> to vector<2x8x4xbf16>
    "tpu.trace_start"() <{level = 10 : i32, message = "bqd,bkd->bqk"}> : () -> ()
    %cst_29 = arith.constant dense<0.000000e+00> : vector<2x8x8xf32>
    %120 = tpu.matmul %115, %117, %cst_29 {dimension_numbers = #tpu.dot_dimension_numbers<[2], [2], [1], [1], [0, 0, 0, 1, 1, 1], [0], [0]>} : vector<2x8x4xbf16>, vector<2x8x4xbf16>, vector<2x8x8xf32> -> vector<2x8x8xf32>
    "tpu.trace_stop"() : () -> ()
    %cst_30 = arith.constant dense<0xFF800000> : vector<2x8xf32>
    %121 = vector.multi_reduction <maximumf>, %120, %cst_30 [2] : vector<2x8x8xf32> to vector<2x8xf32>
    %122 = vector.shape_cast %121 : vector<2x8xf32> to vector<2x8x1xf32>
    %123 = vector.broadcast %122 : vector<2x8x1xf32> to vector<2x8x8xf32>
    %124 = arith.subf %120, %123 : vector<2x8x8xf32>
    %125 = math.exp %124 : vector<2x8x8xf32>
    %cst_31 = arith.constant dense<0.000000e+00> : vector<2x8xf32>
    %126 = vector.multi_reduction <add>, %125, %cst_31 [2] : vector<2x8x8xf32> to vector<2x8xf32>
    %127 = vector.shape_cast %126 : vector<2x8xf32> to vector<2x8x1xf32>
    %128 = tpu.reciprocal %127 {approx = true} : vector<2x8x1xf32> -> vector<2x8x1xf32>
    %129 = vector.broadcast %128 : vector<2x8x1xf32> to vector<2x8x8xf32>
    %130 = arith.mulf %125, %129 : vector<2x8x8xf32>
    %131 = arith.truncf %130 : vector<2x8x8xf32> to vector<2x8x8xbf16>
    "tpu.trace_start"() <{level = 10 : i32, message = "bqk,bkd->bqd"}> : () -> ()
    %cst_32 = arith.constant dense<0.000000e+00> : vector<2x8x4xf32>
    %132 = tpu.matmul %131, %119, %cst_32 {dimension_numbers = #tpu.dot_dimension_numbers<[2], [1], [1], [2], [0, 0, 0, 1, 1, 2], [0], [0]>} : vector<2x8x8xbf16>, vector<2x8x4xbf16>, vector<2x8x4xf32> -> vector<2x8x4xf32>
    "tpu.trace_stop"() : () -> ()
    %133 = vector.shape_cast %132 : vector<2x8x4xf32> to vector<16x4xf32>
    %134 = arith.truncf %133 : vector<16x4xf32> to vector<16x4xbf16>
    %c0_33 = arith.constant 0 : index
    %c16 = arith.constant 16 : index
    %135 = vector.load %arg10[%c0_33, %c16] : memref<16x32xbf16, #tpu.memory_space<vmem>>, vector<16x4xbf16>
    tpu.vector_store %arg10[%c0_33, %c16], %134 {strides = array<i32>} : memref<16x32xbf16, #tpu.memory_space<vmem>>, vector<16x4xbf16>,
    %136 = vector.extract_strided_slice %21 {offsets = [0, 0, 20], sizes = [2, 8, 4], strides = [1, 1, 1]} : vector<2x8x32xf32> to vector<2x8x4xf32>
    %137 = arith.truncf %136 : vector<2x8x4xf32> to vector<2x8x4xbf16>
    %138 = vector.extract_strided_slice %23 {offsets = [0, 0, 20], sizes = [2, 8, 4], strides = [1, 1, 1]} : vector<2x8x32xf32> to vector<2x8x4xf32>
    %139 = arith.truncf %138 : vector<2x8x4xf32> to vector<2x8x4xbf16>
    %140 = vector.extract_strided_slice %25 {offsets = [0, 0, 20], sizes = [2, 8, 4], strides = [1, 1, 1]} : vector<2x8x32xf32> to vector<2x8x4xf32>
    %141 = arith.truncf %140 : vector<2x8x4xf32> to vector<2x8x4xbf16>
    "tpu.trace_start"() <{level = 10 : i32, message = "bqd,bkd->bqk"}> : () -> ()
    %cst_34 = arith.constant dense<0.000000e+00> : vector<2x8x8xf32>
    %142 = tpu.matmul %137, %139, %cst_34 {dimension_numbers = #tpu.dot_dimension_numbers<[2], [2], [1], [1], [0, 0, 0, 1, 1, 1], [0], [0]>} : vector<2x8x4xbf16>, vector<2x8x4xbf16>, vector<2x8x8xf32> -> vector<2x8x8xf32>
    "tpu.trace_stop"() : () -> ()
    %cst_35 = arith.constant dense<0xFF800000> : vector<2x8xf32>
    %143 = vector.multi_reduction <maximumf>, %142, %cst_35 [2] : vector<2x8x8xf32> to vector<2x8xf32>
    %144 = vector.shape_cast %143 : vector<2x8xf32> to vector<2x8x1xf32>
    %145 = vector.broadcast %144 : vector<2x8x1xf32> to vector<2x8x8xf32>
    %146 = arith.subf %142, %145 : vector<2x8x8xf32>
    %147 = math.exp %146 : vector<2x8x8xf32>
    %cst_36 = arith.constant dense<0.000000e+00> : vector<2x8xf32>
    %148 = vector.multi_reduction <add>, %147, %cst_36 [2] : vector<2x8x8xf32> to vector<2x8xf32>
    %149 = vector.shape_cast %148 : vector<2x8xf32> to vector<2x8x1xf32>
    %150 = tpu.reciprocal %149 {approx = true} : vector<2x8x1xf32> -> vector<2x8x1xf32>
    %151 = vector.broadcast %150 : vector<2x8x1xf32> to vector<2x8x8xf32>
    %152 = arith.mulf %147, %151 : vector<2x8x8xf32>
    %153 = arith.truncf %152 : vector<2x8x8xf32> to vector<2x8x8xbf16>
    "tpu.trace_start"() <{level = 10 : i32, message = "bqk,bkd->bqd"}> : () -> ()
    %cst_37 = arith.constant dense<0.000000e+00> : vector<2x8x4xf32>
    %154 = tpu.matmul %153, %141, %cst_37 {dimension_numbers = #tpu.dot_dimension_numbers<[2], [1], [1], [2], [0, 0, 0, 1, 1, 2], [0], [0]>} : vector<2x8x8xbf16>, vector<2x8x4xbf16>, vector<2x8x4xf32> -> vector<2x8x4xf32>
    "tpu.trace_stop"() : () -> ()
    %155 = vector.shape_cast %154 : vector<2x8x4xf32> to vector<16x4xf32>
    %156 = arith.truncf %155 : vector<16x4xf32> to vector<16x4xbf16>
    %c0_38 = arith.constant 0 : index
    %c20 = arith.constant 20 : index
    %157 = vector.load %arg10[%c0_38, %c20] : memref<16x32xbf16, #tpu.memory_space<vmem>>, vector<16x4xbf16>
    tpu.vector_store %arg10[%c0_38, %c20], %156 {strides = array<i32>} : memref<16x32xbf16, #tpu.memory_space<vmem>>, vector<16x4xbf16>,
    %158 = vector.extract_strided_slice %21 {offsets = [0, 0, 24], sizes = [2, 8, 4], strides = [1, 1, 1]} : vector<2x8x32xf32> to vector<2x8x4xf32>
    %159 = arith.truncf %158 : vector<2x8x4xf32> to vector<2x8x4xbf16>
    %160 = vector.extract_strided_slice %23 {offsets = [0, 0, 24], sizes = [2, 8, 4], strides = [1, 1, 1]} : vector<2x8x32xf32> to vector<2x8x4xf32>
    %161 = arith.truncf %160 : vector<2x8x4xf32> to vector<2x8x4xbf16>
    %162 = vector.extract_strided_slice %25 {offsets = [0, 0, 24], sizes = [2, 8, 4], strides = [1, 1, 1]} : vector<2x8x32xf32> to vector<2x8x4xf32>
    %163 = arith.truncf %162 : vector<2x8x4xf32> to vector<2x8x4xbf16>
    "tpu.trace_start"() <{level = 10 : i32, message = "bqd,bkd->bqk"}> : () -> ()
    %cst_39 = arith.constant dense<0.000000e+00> : vector<2x8x8xf32>
    %164 = tpu.matmul %159, %161, %cst_39 {dimension_numbers = #tpu.dot_dimension_numbers<[2], [2], [1], [1], [0, 0, 0, 1, 1, 1], [0], [0]>} : vector<2x8x4xbf16>, vector<2x8x4xbf16>, vector<2x8x8xf32> -> vector<2x8x8xf32>
    "tpu.trace_stop"() : () -> ()
    %cst_40 = arith.constant dense<0xFF800000> : vector<2x8xf32>
    %165 = vector.multi_reduction <maximumf>, %164, %cst_40 [2] : vector<2x8x8xf32> to vector<2x8xf32>
    %166 = vector.shape_cast %165 : vector<2x8xf32> to vector<2x8x1xf32>
    %167 = vector.broadcast %166 : vector<2x8x1xf32> to vector<2x8x8xf32>
    %168 = arith.subf %164, %167 : vector<2x8x8xf32>
    %169 = math.exp %168 : vector<2x8x8xf32>
    %cst_41 = arith.constant dense<0.000000e+00> : vector<2x8xf32>
    %170 = vector.multi_reduction <add>, %169, %cst_41 [2] : vector<2x8x8xf32> to vector<2x8xf32>
    %171 = vector.shape_cast %170 : vector<2x8xf32> to vector<2x8x1xf32>
    %172 = tpu.reciprocal %171 {approx = true} : vector<2x8x1xf32> -> vector<2x8x1xf32>
    %173 = vector.broadcast %172 : vector<2x8x1xf32> to vector<2x8x8xf32>
    %174 = arith.mulf %169, %173 : vector<2x8x8xf32>
    %175 = arith.truncf %174 : vector<2x8x8xf32> to vector<2x8x8xbf16>
    "tpu.trace_start"() <{level = 10 : i32, message = "bqk,bkd->bqd"}> : () -> ()
    %cst_42 = arith.constant dense<0.000000e+00> : vector<2x8x4xf32>
    %176 = tpu.matmul %175, %163, %cst_42 {dimension_numbers = #tpu.dot_dimension_numbers<[2], [1], [1], [2], [0, 0, 0, 1, 1, 2], [0], [0]>} : vector<2x8x8xbf16>, vector<2x8x4xbf16>, vector<2x8x4xf32> -> vector<2x8x4xf32>
    "tpu.trace_stop"() : () -> ()
    %177 = vector.shape_cast %176 : vector<2x8x4xf32> to vector<16x4xf32>
    %178 = arith.truncf %177 : vector<16x4xf32> to vector<16x4xbf16>
    %c0_43 = arith.constant 0 : index
    %c24 = arith.constant 24 : index
    %179 = vector.load %arg10[%c0_43, %c24] : memref<16x32xbf16, #tpu.memory_space<vmem>>, vector<16x4xbf16>
    tpu.vector_store %arg10[%c0_43, %c24], %178 {strides = array<i32>} : memref<16x32xbf16, #tpu.memory_space<vmem>>, vector<16x4xbf16>,
    %180 = vector.extract_strided_slice %21 {offsets = [0, 0, 28], sizes = [2, 8, 4], strides = [1, 1, 1]} : vector<2x8x32xf32> to vector<2x8x4xf32>
    %181 = arith.truncf %180 : vector<2x8x4xf32> to vector<2x8x4xbf16>
    %182 = vector.extract_strided_slice %23 {offsets = [0, 0, 28], sizes = [2, 8, 4], strides = [1, 1, 1]} : vector<2x8x32xf32> to vector<2x8x4xf32>
    %183 = arith.truncf %182 : vector<2x8x4xf32> to vector<2x8x4xbf16>
    %184 = vector.extract_strided_slice %25 {offsets = [0, 0, 28], sizes = [2, 8, 4], strides = [1, 1, 1]} : vector<2x8x32xf32> to vector<2x8x4xf32>
    %185 = arith.truncf %184 : vector<2x8x4xf32> to vector<2x8x4xbf16>
    "tpu.trace_start"() <{level = 10 : i32, message = "bqd,bkd->bqk"}> : () -> ()
    %cst_44 = arith.constant dense<0.000000e+00> : vector<2x8x8xf32>
    %186 = tpu.matmul %181, %183, %cst_44 {dimension_numbers = #tpu.dot_dimension_numbers<[2], [2], [1], [1], [0, 0, 0, 1, 1, 1], [0], [0]>} : vector<2x8x4xbf16>, vector<2x8x4xbf16>, vector<2x8x8xf32> -> vector<2x8x8xf32>
    "tpu.trace_stop"() : () -> ()
    %cst_45 = arith.constant dense<0xFF800000> : vector<2x8xf32>
    %187 = vector.multi_reduction <maximumf>, %186, %cst_45 [2] : vector<2x8x8xf32> to vector<2x8xf32>
    %188 = vector.shape_cast %187 : vector<2x8xf32> to vector<2x8x1xf32>
    %189 = vector.broadcast %188 : vector<2x8x1xf32> to vector<2x8x8xf32>
    %190 = arith.subf %186, %189 : vector<2x8x8xf32>
    %191 = math.exp %190 : vector<2x8x8xf32>
    %cst_46 = arith.constant dense<0.000000e+00> : vector<2x8xf32>
    %192 = vector.multi_reduction <add>, %191, %cst_46 [2] : vector<2x8x8xf32> to vector<2x8xf32>
    %193 = vector.shape_cast %192 : vector<2x8xf32> to vector<2x8x1xf32>
    %194 = tpu.reciprocal %193 {approx = true} : vector<2x8x1xf32> -> vector<2x8x1xf32>
    %195 = vector.broadcast %194 : vector<2x8x1xf32> to vector<2x8x8xf32>
    %196 = arith.mulf %191, %195 : vector<2x8x8xf32>
    %197 = arith.truncf %196 : vector<2x8x8xf32> to vector<2x8x8xbf16>
    "tpu.trace_start"() <{level = 10 : i32, message = "bqk,bkd->bqd"}> : () -> ()
    %cst_47 = arith.constant dense<0.000000e+00> : vector<2x8x4xf32>
    %198 = tpu.matmul %197, %185, %cst_47 {dimension_numbers = #tpu.dot_dimension_numbers<[2], [1], [1], [2], [0, 0, 0, 1, 1, 2], [0], [0]>} : vector<2x8x8xbf16>, vector<2x8x4xbf16>, vector<2x8x4xf32> -> vector<2x8x4xf32>
    "tpu.trace_stop"() : () -> ()
    %199 = vector.shape_cast %198 : vector<2x8x4xf32> to vector<16x4xf32>
    %200 = arith.truncf %199 : vector<16x4xf32> to vector<16x4xbf16>
    %c0_48 = arith.constant 0 : index
    %c28 = arith.constant 28 : index
    %201 = vector.load %arg10[%c0_48, %c28] : memref<16x32xbf16, #tpu.memory_space<vmem>>, vector<16x4xbf16>
    tpu.vector_store %arg10[%c0_48, %c28], %200 {strides = array<i32>} : memref<16x32xbf16, #tpu.memory_space<vmem>>, vector<16x4xbf16>,
    %c0_49 = arith.constant 0 : index
    %c0_50 = arith.constant 0 : index
    %202 = vector.load %arg10[%c0_49, %c0_50] : memref<16x32xbf16, #tpu.memory_space<vmem>>, vector<16x32xbf16>
    %c0_51 = arith.constant 0 : index
    %c0_52 = arith.constant 0 : index
    %c0_53 = arith.constant 0 : index
    %203 = vector.load %arg4[%c0_51, %c0_52, %c0_53] : memref<1x32x32xbf16, #tpu.memory_space<vmem>>, vector<1x32x32xbf16>
    %204 = vector.shape_cast %203 : vector<1x32x32xbf16> to vector<32x32xbf16>
    %cst_54 = arith.constant dense<0.000000e+00> : vector<16x32xf32>
    %205 = tpu.matmul %202, %204, %cst_54 {dimension_numbers = #tpu.dot_dimension_numbers<[1], [0], [0], [1], [0, 0, 1, 1], [], []>} : vector<16x32xbf16>, vector<32x32xbf16>, vector<16x32xf32> -> vector<16x32xf32>
    %206 = vector.broadcast %6 : vector<1x32xf32> to vector<16x32xf32>
    %207 = arith.addf %205, %206 : vector<16x32xf32>
    %208 = arith.addf %13, %207 : vector<16x32xf32>
    %cst_55 = arith.constant dense<0.000000e+00> : vector<16xf32>
    %209 = vector.multi_reduction <add>, %208, %cst_55 [1] : vector<16x32xf32> to vector<16xf32>
    %210 = vector.shape_cast %209 : vector<16xf32> to vector<16x1xf32>
    %cst_56 = arith.constant 3.200000e+01 : f32
    %211 = vector.broadcast %cst_56 : f32 to vector<16x1xf32>
    %212 = arith.divf %210, %211 : vector<16x1xf32>
    %213 = vector.broadcast %212 : vector<16x1xf32> to vector<16x32xf32>
    %214 = arith.subf %208, %213 : vector<16x32xf32>
    %215 = arith.mulf %214, %214 : vector<16x32xf32>
    %cst_57 = arith.constant dense<0.000000e+00> : vector<16xf32>
    %216 = vector.multi_reduction <add>, %215, %cst_57 [1] : vector<16x32xf32> to vector<16xf32>
    %217 = vector.shape_cast %216 : vector<16xf32> to vector<16x1xf32>
    %cst_58 = arith.constant 3.200000e+01 : f32
    %218 = vector.broadcast %cst_58 : f32 to vector<16x1xf32>
    %219 = arith.divf %217, %218 : vector<16x1xf32>
    %220 = vector.broadcast %212 : vector<16x1xf32> to vector<16x32xf32>
    %221 = arith.subf %208, %220 : vector<16x32xf32>
    %cst_59 = arith.constant 9.99999974E-6 : f32
    %222 = vector.broadcast %cst_59 : f32 to vector<16x1xf32>
    %223 = arith.addf %219, %222 : vector<16x1xf32>
    %224 = math.rsqrt %223 : vector<16x1xf32>
    %225 = vector.broadcast %224 : vector<16x1xf32> to vector<16x32xf32>
    %226 = arith.mulf %221, %225 : vector<16x32xf32>
    %227 = vector.broadcast %9 : vector<1x32xf32> to vector<16x32xf32>
    %228 = arith.mulf %226, %227 : vector<16x32xf32>
    %229 = vector.broadcast %10 : vector<1x32xf32> to vector<16x32xf32>
    %230 = arith.addf %228, %229 : vector<16x32xf32>
    %231 = arith.truncf %230 : vector<16x32xf32> to vector<16x32xbf16>
    %c0_60 = arith.constant 0 : index
    %c0_61 = arith.constant 0 : index
    %c0_62 = arith.constant 0 : index
    %232 = vector.load %arg5[%c0_60, %c0_61, %c0_62] : memref<1x32x64xbf16, #tpu.memory_space<vmem>>, vector<1x32x64xbf16>
    %233 = vector.shape_cast %232 : vector<1x32x64xbf16> to vector<32x64xbf16>
    %cst_63 = arith.constant dense<0.000000e+00> : vector<16x64xf32>
    %234 = tpu.matmul %231, %233, %cst_63 {dimension_numbers = #tpu.dot_dimension_numbers<[1], [0], [0], [1], [0, 0, 1, 1], [], []>} : vector<16x32xbf16>, vector<32x64xbf16>, vector<16x64xf32> -> vector<16x64xf32>
    %235 = vector.broadcast %7 : vector<1x64xf32> to vector<16x64xf32>
    %236 = arith.addf %234, %235 : vector<16x64xf32>
    %cst_64 = arith.constant 0.000000e+00 : f32
    %237 = vector.broadcast %cst_64 : f32 to vector<16x64xf32>
    %238 = arith.maximumf %236, %237 : vector<16x64xf32>
    %239 = arith.truncf %238 : vector<16x64xf32> to vector<16x64xbf16>
    %c0_65 = arith.constant 0 : index
    %c0_66 = arith.constant 0 : index
    %c0_67 = arith.constant 0 : index
    %240 = vector.load %arg6[%c0_65, %c0_66, %c0_67] : memref<1x64x32xbf16, #tpu.memory_space<vmem>>, vector<1x64x32xbf16>
    %241 = vector.shape_cast %240 : vector<1x64x32xbf16> to vector<64x32xbf16>
    %cst_68 = arith.constant dense<0.000000e+00> : vector<16x32xf32>
    %242 = tpu.matmul %239, %241, %cst_68 {dimension_numbers = #tpu.dot_dimension_numbers<[1], [0], [0], [1], [0, 0, 1, 1], [], []>} : vector<16x64xbf16>, vector<64x32xbf16>, vector<16x32xf32> -> vector<16x32xf32>
    %243 = vector.broadcast %8 : vector<1x32xf32> to vector<16x32xf32>
    %244 = arith.addf %242, %243 : vector<16x32xf32>
    %245 = arith.addf %230, %244 : vector<16x32xf32>
    %cst_69 = arith.constant dense<0.000000e+00> : vector<16xf32>
    %246 = vector.multi_reduction <add>, %245, %cst_69 [1] : vector<16x32xf32> to vector<16xf32>
    %247 = vector.shape_cast %246 : vector<16xf32> to vector<16x1xf32>
    %cst_70 = arith.constant 3.200000e+01 : f32
    %248 = vector.broadcast %cst_70 : f32 to vector<16x1xf32>
    %249 = arith.divf %247, %248 : vector<16x1xf32>
    %250 = vector.broadcast %249 : vector<16x1xf32> to vector<16x32xf32>
    %251 = arith.subf %245, %250 : vector<16x32xf32>
    %252 = arith.mulf %251, %251 : vector<16x32xf32>
    %cst_71 = arith.constant dense<0.000000e+00> : vector<16xf32>
    %253 = vector.multi_reduction <add>, %252, %cst_71 [1] : vector<16x32xf32> to vector<16xf32>
    %254 = vector.shape_cast %253 : vector<16xf32> to vector<16x1xf32>
    %cst_72 = arith.constant 3.200000e+01 : f32
    %255 = vector.broadcast %cst_72 : f32 to vector<16x1xf32>
    %256 = arith.divf %254, %255 : vector<16x1xf32>
    %257 = vector.broadcast %249 : vector<16x1xf32> to vector<16x32xf32>
    %258 = arith.subf %245, %257 : vector<16x32xf32>
    %cst_73 = arith.constant 9.99999974E-6 : f32
    %259 = vector.broadcast %cst_73 : f32 to vector<16x1xf32>
    %260 = arith.addf %256, %259 : vector<16x1xf32>
    %261 = math.rsqrt %260 : vector<16x1xf32>
    %262 = vector.broadcast %261 : vector<16x1xf32> to vector<16x32xf32>
    %263 = arith.mulf %258, %262 : vector<16x32xf32>
    %264 = vector.broadcast %11 : vector<1x32xf32> to vector<16x32xf32>
    %265 = arith.mulf %263, %264 : vector<16x32xf32>
    %266 = vector.broadcast %12 : vector<1x32xf32> to vector<16x32xf32>
    %267 = arith.addf %265, %266 : vector<16x32xf32>
    %c1_i32 = arith.constant 1 : i32
    %268 = arith.cmpi ne, %arg1, %c1_i32 : i32
    %269 = arith.extui %268 : i1 to i32
    %c0_i32_74 = arith.constant 0 : i32
    %270 = arith.cmpi ne, %269, %c0_i32_74 : i32
    scf.if %270 {
      %c0_77 = arith.constant 0 : index
      %c0_78 = arith.constant 0 : index
      %274 = vector.load %arg9[%c0_77, %c0_78] : memref<16x32xf32, #tpu.memory_space<vmem>>, vector<16x32xf32>
      tpu.vector_store %arg9[%c0_77, %c0_78], %267 {strides = array<i32>} : memref<16x32xf32, #tpu.memory_space<vmem>>, vector<16x32xf32>,
    } else {
    }
    %c1_i32_75 = arith.constant 1 : i32
    %271 = arith.cmpi eq, %arg1, %c1_i32_75 : i32
    %272 = arith.extui %271 : i1 to i32
    %c0_i32_76 = arith.constant 0 : i32
    %273 = arith.cmpi ne, %272, %c0_i32_76 : i32
    scf.if %273 {
      %274 = vector.shape_cast %267 : vector<16x32xf32> to vector<2x8x32xf32>
      %c0_77 = arith.constant 0 : index
      %c0_78 = arith.constant 0 : index
      %c0_79 = arith.constant 0 : index
      %275 = vector.load %arg8[%c0_77, %c0_78, %c0_79] : memref<2x8x32xf32, #tpu.memory_space<vmem>>, vector<2x8x32xf32>
      tpu.vector_store %arg8[%c0_77, %c0_78, %c0_79], %274 {strides = array<i32>} : memref<2x8x32xf32, #tpu.memory_space<vmem>>, vector<2x8x32xf32>,
    } else {
    }
    return
  }
  func.func @transform_0(%arg0: i32, %arg1: i32) -> (i32, i32, i32) {
    %c0_i32 = arith.constant 0 : i32
    %c0_i32_0 = arith.constant 0 : i32
    %c0_i32_1 = arith.constant 0 : i32
    return %arg0, %c0_i32, %c0_i32_0 : i32, i32, i32
  }
  func.func @transform_1(%arg0: i32, %arg1: i32) -> (i32, i32, i32) {
    %c0_i32 = arith.constant 0 : i32
    %c0_i32_0 = arith.constant 0 : i32
    %c0_i32_1 = arith.constant 0 : i32
    return %arg1, %c0_i32, %c0_i32_0 : i32, i32, i32
  }
  func.func @transform_2(%arg0: i32, %arg1: i32) -> (i32, i32, i32) {
    %c0_i32 = arith.constant 0 : i32
    %c0_i32_0 = arith.constant 0 : i32
    %c0_i32_1 = arith.constant 0 : i32
    return %arg1, %c0_i32, %c0_i32_0 : i32, i32, i32
  }
  func.func @transform_3(%arg0: i32, %arg1: i32) -> (i32, i32, i32) {
    %c0_i32 = arith.constant 0 : i32
    %c0_i32_0 = arith.constant 0 : i32
    %c0_i32_1 = arith.constant 0 : i32
    return %arg1, %c0_i32, %c0_i32_0 : i32, i32, i32
  }
  func.func @transform_4(%arg0: i32, %arg1: i32) -> (i32, i32, i32) {
    %c0_i32 = arith.constant 0 : i32
    %c0_i32_0 = arith.constant 0 : i32
    %c0_i32_1 = arith.constant 0 : i32
    return %arg1, %c0_i32, %c0_i32_0 : i32, i32, i32
  }
  func.func @transform_5(%arg0: i32, %arg1: i32) -> (i32, i32, i32) {
    %c0_i32 = arith.constant 0 : i32
    %c0_i32_0 = arith.constant 0 : i32
    %c0_i32_1 = arith.constant 0 : i32
    return %arg1, %c0_i32, %c0_i32_0 : i32, i32, i32
  }
  func.func @transform_6(%arg0: i32, %arg1: i32) -> (i32, i32, i32) {
    %c0_i32 = arith.constant 0 : i32
    %c0_i32_0 = arith.constant 0 : i32
    %c0_i32_1 = arith.constant 0 : i32
    return %arg0, %c0_i32, %c0_i32_0 : i32, i32, i32
  }
}

</mosaic_0001>

<llo_original>
// kernel: transformer_projector.1
$region0: #{transformer_projector.1}
  #allocation0 [shape = 'u32[]', space=smem, size = 0x4, offset = 0x4, fixed_abs, tag = 'smem constant byte address 0x4 - core index']
  #allocation1 [shape = 'u32[72,128]{1,0:T(1,128)}', space=vmem, size = 0x9000, scoped, tag = 'internal scratch']
  #allocation2 [shape = 'f32[16,32]{1,0:T(8,128)}', space=vmem, size = 0x2000, scoped, tag = 'scratch operand']
  #allocation3 [shape = 'bf16[16,32]{1,0:T(8,128)(2,1)}', space=vmem, size = 0x1000, scoped, tag = 'scratch operand']
  %s0 = inlined_call_operand.hbm [shape: f32[2,8,32], index: 0, kind: input, shape index: {}]
  %s1 = inlined_call_operand.vmem [shape: bf16[2,32,96], index: 1, kind: input, shape index: {}]
  %s2 = inlined_call_operand.vmem [shape: bf16[2,32,32], index: 2, kind: input, shape index: {}]
  %s3 = inlined_call_operand.vmem [shape: bf16[2,32,64], index: 3, kind: input, shape index: {}]
  %s4 = inlined_call_operand.vmem [shape: bf16[2,64,32], index: 4, kind: input, shape index: {}]
  %s5 = inlined_call_operand.hbm [shape: f32[2,8,96], index: 5, kind: input, shape index: {}]
  %s6 = inlined_call_operand.hbm [shape: f32[2,8,32], index: 6, kind: output, shape index: {}]
  %s7 = sld [smem:[#allocation0]]
  $region77: #{transformer_projector.1} parent=0
    _
  %s9 = ssub.s32 1, %s7
  %s10 = scalar_select 0, %s9, %s7
  $region1: #{transformer_projector.1} parent=0
    #allocation4 [shape = 'u8[8192]{0}', space=vmem, size = 0x2000, scoped, tag = 'input window, operand 0, single buffered']
    #allocation5 [shape = 's32[2]{0}', space=sflag, size = 0x8, scoped, tag = 'scoped memory for transformer_projector.1']
    #allocation6 [shape = 's32[2]{0}', space=sflag, size = 0x8, scoped, tag = 'scoped memory for transformer_projector.1']
    #allocation7 [shape = 'u8[8192]{0}', space=vmem, size = 0x2000, scoped, tag = 'input window, operand 5']
    #allocation8 [shape = 's32[2]{0}', space=sflag, size = 0x8, scoped, tag = 'scoped memory for transformer_projector.1']
    #allocation9 [shape = 'u8[8192]{0}', space=vmem, size = 0x2000, scoped, tag = 'output window, operand 0, single buffered']
    %11 = vsyncpa [#allocation5], 0
    %12 = vsyncpa [#allocation8], 0
    %s13 = scalar_lea.sflag [#allocation8], 1
    %14 = vsyncpa %s13, 0
    %15 = vsyncpa [#allocation6], 0
    loop: start=0, step=1, limit=4
    $region2: #{transformer_projector.1} parent=1 // loop_pre_header
      _
    $region3: #{transformer_projector.1} parent=1 // loop_header
      %s17 = sphi 0, %s21
      %p18 = scmp.ge.s32.totalorder %s17, 4
      %s24 = sphi 0, %s36
      %s25 = sphi 0, %s32
      %s26 = sphi 0, %s24
      %s27 = sphi 0, %s25
      %s28 = sphi 0, %s26
      %s29 = sphi 0, %s27
      %s39 = sphi 0, %s41
      %s42 = sphi 0, %s39
      %s43 = sphi 0, %s42
      %s59 = sphi 0, %s43
      %s65 = sphi 0, %s67
      %s68 = sphi 0, %s65
      %s69 = sphi 0, %s68
      %s85 = sphi 0, %s69
      %s91 = sphi 0, %s93
      %s94 = sphi 0, %s91
      %s95 = sphi 0, %s94
      %s111 = sphi 0, %s95
      %s117 = sphi 0, %s119
      %s120 = sphi 0, %s117
      %s121 = sphi 0, %s120
      %s137 = sphi 0, %s121
      %s143 = sphi 0, %s145
      %s146 = sphi 0, %s143
      %s147 = sphi 0, %s146
      %s163 = sphi 0, %s147
      %s169 = sphi 0, %s171
      %s172 = sphi 0, %s169
      %s173 = sphi 0, %s172
      %s189 = sphi 0, %s173
      %s195 = sphi 0, %s197
      %s198 = sphi 0, %s195
      %s199 = sphi 0, %s198
      %s215 = sphi 0, %s199
    $region4: #{transformer_projector.1} parent=1 // loop_header_branch
      %20 = sbr.rel (%p18) target = $region8
    $region5: #{transformer_projector.1} parent=1 // loop_body
      %s22 = ssub.s32 %s17, 1
      %s23 = ssub.s32 %s17, 2
      %s30 = sadd.s32 1, %s25
      %p31 = scmp.ge.s32.totalorder %s30, 2
      %s32 = scalar_select %p31, 0, %s30
      %s33 = sadd.s32 1, %s24
      %s34 = scalar_select %p31, %s33, %s24
      %p35 = scmp.ge.s32.totalorder %s34, 1
      %s36 = scalar_select %p35, 0, %s34
      %s37 = ssub.s32 %s24, %s36
      %p38 = scmp.eq.s32.totalorder %s37, 0
      %s40 = sadd.s32 %s39, 1
      %s41 = scalar_select %p38, %s39, %s40
      %p44 = pneg %p38
      %p45 = scmp.eq.s32.totalorder %s17, 1
      %p46 = por %p44, %p45
      %p47 = scmp.ne.s32.totalorder %s39, %s42
      %p48 = scmp.eq.s32.totalorder %s17, 0
      %p49 = por %p47, %p48
      %p50 = scmp.ne.s32.totalorder %s39, %s42
      %p51 = scmp.eq.s32.totalorder %s22, 1
      %p52 = por %p50, %p51
      %p53 = scmp.ne.s32.totalorder %s42, %s43
      %p54 = scmp.eq.s32.totalorder %s22, 0
      %p55 = por %p53, %p54
      %p56 = scmp.ne.s32.totalorder %s42, %s43
      %p57 = scmp.eq.s32.totalorder %s23, 1
      %p58 = por %p56, %p57
      %p60 = scmp.ne.s32.totalorder %s43, %s59
      %p61 = scmp.eq.s32.totalorder %s23, 0
      %p62 = por %p60, %p61
      %s63 = ssub.s32 %s25, %s32
      %p64 = scmp.eq.s32.totalorder %s63, 0
      %s66 = sadd.s32 %s65, 1
      %s67 = scalar_select %p64, %s65, %s66
      %p70 = pneg %p64
      %p71 = scmp.eq.s32.totalorder %s17, 1
      %p72 = por %p70, %p71
      %p73 = scmp.ne.s32.totalorder %s65, %s68
      %p74 = scmp.eq.s32.totalorder %s17, 0
      %p75 = por %p73, %p74
      %p76 = scmp.ne.s32.totalorder %s65, %s68
      %p77 = scmp.eq.s32.totalorder %s22, 1
      %p78 = por %p76, %p77
      %p79 = scmp.ne.s32.totalorder %s68, %s69
      %p80 = scmp.eq.s32.totalorder %s22, 0
      %p81 = por %p79, %p80
      %p82 = scmp.ne.s32.totalorder %s68, %s69
      %p83 = scmp.eq.s32.totalorder %s23, 1
      %p84 = por %p82, %p83
      %p86 = scmp.ne.s32.totalorder %s69, %s85
      %p87 = scmp.eq.s32.totalorder %s23, 0
      %p88 = por %p86, %p87
      %s89 = ssub.s32 %s25, %s32
      %p90 = scmp.eq.s32.totalorder %s89, 0
      %s92 = sadd.s32 %s91, 1
      %s93 = scalar_select %p90, %s91, %s92
      %p96 = pneg %p90
      %p97 = scmp.eq.s32.totalorder %s17, 1
      %p98 = por %p96, %p97
      %p99 = scmp.ne.s32.totalorder %s91, %s94
      %p100 = scmp.eq.s32.totalorder %s17, 0
      %p101 = por %p99, %p100
      %p102 = scmp.ne.s32.totalorder %s91, %s94
      %p103 = scmp.eq.s32.totalorder %s22, 1
      %p104 = por %p102, %p103
      %p105 = scmp.ne.s32.totalorder %s94, %s95
      %p106 = scmp.eq.s32.totalorder %s22, 0
      %p107 = por %p105, %p106
      %p108 = scmp.ne.s32.totalorder %s94, %s95
      %p109 = scmp.eq.s32.totalorder %s23, 1
      %p110 = por %p108, %p109
      %p112 = scmp.ne.s32.totalorder %s95, %s111
      %p113 = scmp.eq.s32.totalorder %s23, 0
      %p114 = por %p112, %p113
      %s115 = ssub.s32 %s25, %s32
      %p116 = scmp.eq.s32.totalorder %s115, 0
      %s118 = sadd.s32 %s117, 1
      %s119 = scalar_select %p116, %s117, %s118
      %p122 = pneg %p116
      %p123 = scmp.eq.s32.totalorder %s17, 1
      %p124 = por %p122, %p123
      %p125 = scmp.ne.s32.totalorder %s117, %s120
      %p126 = scmp.eq.s32.totalorder %s17, 0
      %p127 = por %p125, %p126
      %p128 = scmp.ne.s32.totalorder %s117, %s120
      %p129 = scmp.eq.s32.totalorder %s22, 1
      %p130 = por %p128, %p129
      %p131 = scmp.ne.s32.totalorder %s120, %s121
      %p132 = scmp.eq.s32.totalorder %s22, 0
      %p133 = por %p131, %p132
      %p134 = scmp.ne.s32.totalorder %s120, %s121
      %p135 = scmp.eq.s32.totalorder %s23, 1
      %p136 = por %p134, %p135
      %p138 = scmp.ne.s32.totalorder %s121, %s137
      %p139 = scmp.eq.s32.totalorder %s23, 0
      %p140 = por %p138, %p139
      %s141 = ssub.s32 %s25, %s32
      %p142 = scmp.eq.s32.totalorder %s141, 0
      %s144 = sadd.s32 %s143, 1
      %s145 = scalar_select %p142, %s143, %s144
      %p148 = pneg %p142
      %p149 = scmp.eq.s32.totalorder %s17, 1
      %p150 = por %p148, %p149
      %p151 = scmp.ne.s32.totalorder %s143, %s146
      %p152 = scmp.eq.s32.totalorder %s17, 0
      %p153 = por %p151, %p152
      %p154 = scmp.ne.s32.totalorder %s143, %s146
      %p155 = scmp.eq.s32.totalorder %s22, 1
      %p156 = por %p154, %p155
      %p157 = scmp.ne.s32.totalorder %s146, %s147
      %p158 = scmp.eq.s32.totalorder %s22, 0
      %p159 = por %p157, %p158
      %p160 = scmp.ne.s32.totalorder %s146, %s147
      %p161 = scmp.eq.s32.totalorder %s23, 1
      %p162 = por %p160, %p161
      %p164 = scmp.ne.s32.totalorder %s147, %s163
      %p165 = scmp.eq.s32.totalorder %s23, 0
      %p166 = por %p164, %p165
      %s167 = ssub.s32 %s25, %s32
      %p168 = scmp.eq.s32.totalorder %s167, 0
      %s170 = sadd.s32 %s169, 1
      %s171 = scalar_select %p168, %s169, %s170
      %p174 = pneg %p168
      %p175 = scmp.eq.s32.totalorder %s17, 1
      %p176 = por %p174, %p175
      %p177 = scmp.ne.s32.totalorder %s169, %s172
      %p178 = scmp.eq.s32.totalorder %s17, 0
      %p179 = por %p177, %p178
      %p180 = scmp.ne.s32.totalorder %s169, %s172
      %p181 = scmp.eq.s32.totalorder %s22, 1
      %p182 = por %p180, %p181
      %p183 = scmp.ne.s32.totalorder %s172, %s173
      %p184 = scmp.eq.s32.totalorder %s22, 0
      %p185 = por %p183, %p184
      %p186 = scmp.ne.s32.totalorder %s172, %s173
      %p187 = scmp.eq.s32.totalorder %s23, 1
      %p188 = por %p186, %p187
      %p190 = scmp.ne.s32.totalorder %s173, %s189
      %p191 = scmp.eq.s32.totalorder %s23, 0
      %p192 = por %p190, %p191
      %s193 = ssub.s32 %s24, %s36
      %p194 = scmp.eq.s32.totalorder %s193, 0
      %s196 = sadd.s32 %s195, 1
      %s197 = scalar_select %p194, %s195, %s196
      %p200 = pneg %p194
      %p201 = scmp.eq.s32.totalorder %s17, 1
      %p202 = por %p200, %p201
      %p203 = scmp.ne.s32.totalorder %s195, %s198
      %p204 = scmp.eq.s32.totalorder %s17, 0
      %p205 = por %p203, %p204
      %p206 = scmp.ne.s32.totalorder %s195, %s198
      %p207 = scmp.eq.s32.totalorder %s22, 1
      %p208 = por %p206, %p207
      %p209 = scmp.ne.s32.totalorder %s198, %s199
      %p210 = scmp.eq.s32.totalorder %s22, 0
      %p211 = por %p209, %p210
      %p212 = scmp.ne.s32.totalorder %s198, %s199
      %p213 = scmp.eq.s32.totalorder %s23, 1
      %p214 = por %p212, %p213
      %p216 = scmp.ne.s32.totalorder %s199, %s215
      %p217 = scmp.eq.s32.totalorder %s23, 0
      %p218 = por %p216, %p217
      %p219 = scmp.le.s32.totalorder 1, %s17
      %p220 = scmp.lt.s32.totalorder %s17, 3
      %p221 = pnand %p219, %p220
      %p222 = pneg %p221
      // Predicated region
      $region9: #{transformer_projector.1} parent=5 // pred_check
        _
      $region10: #{transformer_projector.1} parent=5 // pred_check_branch
        %224 = sbr.rel (%p221) target = $region12
      $region11: #{transformer_projector.1} parent=5 // pred_region
        %s225 = ssub.s32 %s17, 1
        // Predicated region
        $region13: #{transformer_projector.1} parent=11 // pred_check
          %p226 = pneg %p55
        $region14: #{transformer_projector.1} parent=11 // pred_check_branch
          %228 = sbr.rel (%p226) target = $region16
        $region15: #{transformer_projector.1} parent=11 // pred_region
          %s229 = smul.u32 2, %s26
          %231 = vsyncadd [#allocation5], 0
          %s232 = smul.addr %s229, 8
          %s233 = scalar_lea.hbm %s0, %s232
          %s234 = sshll.u32 %s233, 4
          %s235 = int_to_ptr.hbm [resolvable:$true] %s234
          %s236 = sshll.u32 [#allocation4], 4
          %s237 = int_to_ptr.vmem [resolvable:$true] %s236
          %242 = dma.hbm_to_vmem [thread:$0]  %s235, 256, %s237, [#allocation5], 128, 128, 8
        $region16: #{transformer_projector.1} parent=11 // pred_fallthru
          _
      $region12: #{transformer_projector.1} parent=5 // pred_fallthru
        _
      %p243 = scmp.lt.s32.totalorder %s17, 2
      // Predicated region
      $region17: #{transformer_projector.1} parent=5 // pred_check
        %p244 = pneg %p243
      $region18: #{transformer_projector.1} parent=5 // pred_check_branch
        %246 = sbr.rel (%p244) target = $region20
      $region19: #{transformer_projector.1} parent=5 // pred_region
        // Predicated region
        $region21: #{transformer_projector.1} parent=19 // pred_check
          %p247 = pneg %p75
        $region22: #{transformer_projector.1} parent=19 // pred_check_branch
          %249 = sbr.rel (%p247) target = $region24
        $region23: #{transformer_projector.1} parent=19 // pred_region
          %p250 = scmp.lt.s32.totalorder %s25, 1
          %s251 = scalar_select %p250, %s25, 1
          %s252 = smul.addr %s251, 4
          %s253 = smul.addr %s252, 4
          %s254 = scalar_lea.vmem %s1, %s253
        $region24: #{transformer_projector.1} parent=19 // pred_fallthru
          _
        // Predicated region
        $region25: #{transformer_projector.1} parent=19 // pred_check
          %p255 = pneg %p101
        $region26: #{transformer_projector.1} parent=19 // pred_check_branch
          %257 = sbr.rel (%p255) target = $region28
        $region27: #{transformer_projector.1} parent=19 // pred_region
          %p258 = scmp.lt.s32.totalorder %s25, 1
          %s259 = scalar_select %p258, %s25, 1
          %s260 = smul.addr %s259, 4
          %s261 = smul.addr %s260, 4
          %s262 = scalar_lea.vmem %s2, %s261
        $region28: #{transformer_projector.1} parent=19 // pred_fallthru
          _
        // Predicated region
        $region29: #{transformer_projector.1} parent=19 // pred_check
          %p263 = pneg %p127
        $region30: #{transformer_projector.1} parent=19 // pred_check_branch
          %265 = sbr.rel (%p263) target = $region32
        $region31: #{transformer_projector.1} parent=19 // pred_region
          %p266 = scmp.lt.s32.totalorder %s25, 1
          %s267 = scalar_select %p266, %s25, 1
          %s268 = smul.addr %s267, 4
          %s269 = smul.addr %s268, 4
          %s270 = scalar_lea.vmem %s3, %s269
        $region32: #{transformer_projector.1} parent=19 // pred_fallthru
          _
        // Predicated region
        $region33: #{transformer_projector.1} parent=19 // pred_check
          %p271 = pneg %p153
        $region34: #{transformer_projector.1} parent=19 // pred_check_branch
          %273 = sbr.rel (%p271) target = $region36
        $region35: #{transformer_projector.1} parent=19 // pred_region
          %p274 = scmp.lt.s32.totalorder %s25, 1
          %s275 = scalar_select %p274, %s25, 1
          %s276 = smul.addr %s275, 8
          %s277 = smul.addr %s276, 4
          %s278 = scalar_lea.vmem %s4, %s277
        $region36: #{transformer_projector.1} parent=19 // pred_fallthru
          _
        // Predicated region
        $region37: #{transformer_projector.1} parent=19 // pred_check
          %p279 = pneg %p179
        $region38: #{transformer_projector.1} parent=19 // pred_check_branch
          %281 = sbr.rel (%p279) target = $region40
        $region39: #{transformer_projector.1} parent=19 // pred_region
          %s282 = sand.u32 %s169, 1
          %s283 = scalar_lea.sflag [#allocation8], %s282
          %s284 = sand.u32 %s169, 1
          %s285 = smul.addr %s284, 8
          %s286 = scalar_lea.vmem [#allocation7], %s285
          %288 = vsyncadd %s283, 0
          %s289 = smul.addr %s25, 8
          %s290 = scalar_lea.hbm %s5, %s289
          %s292 = sshll.u32 %s290, 4
          %s293 = int_to_ptr.hbm [resolvable:$true] %s292
          %s294 = sshll.u32 %s286, 4
          %s295 = int_to_ptr.vmem [resolvable:$true] %s294
          %297 = dma.hbm_to_vmem [thread:$0]  %s293, 128, %s295, %s283
        $region40: #{transformer_projector.1} parent=19 // pred_fallthru
          _
      $region20: #{transformer_projector.1} parent=5 // pred_fallthru
        _
      %p298 = scmp.le.s32.totalorder 1, %s17
      %p299 = scmp.lt.s32.totalorder %s17, 3
      %p300 = pnand %p298, %p299
      %p301 = pneg %p300
      // Predicated region
      $region41: #{transformer_projector.1} parent=5 // pred_check
        _
      $region42: #{transformer_projector.1} parent=5 // pred_check_branch
        %303 = sbr.rel (%p300) target = $region44
      $region43: #{transformer_projector.1} parent=5 // pred_region
        %s304 = ssub.s32 %s17, 1
        // Predicated region
        $region45: #{transformer_projector.1} parent=43 // pred_check
          %p305 = pneg %p55
        $region46: #{transformer_projector.1} parent=43 // pred_check_branch
          %307 = sbr.rel (%p305) target = $region48
        $region47: #{transformer_projector.1} parent=43 // pred_region
          %309 = dma.done [#allocation5], 256
        $region48: #{transformer_projector.1} parent=43 // pred_fallthru
          _
        %s310 = sand.u32 %s172, 1
        %s311 = scalar_lea.sflag [#allocation8], %s310
        %s312 = sand.u32 %s172, 1
        %s313 = smul.addr %s312, 8
        %s314 = scalar_lea.vmem [#allocation7], %s313
        // Predicated region
        $region49: #{transformer_projector.1} parent=43 // pred_check
          %p315 = pneg %p185
        $region50: #{transformer_projector.1} parent=43 // pred_check_branch
          %317 = sbr.rel (%p315) target = $region52
        $region51: #{transformer_projector.1} parent=43 // pred_region
          %319 = dma.done %s311, 128
        $region52: #{transformer_projector.1} parent=43 // pred_fallthru
          _
        %p320 = pneg %p55
        %p321 = pneg %p52
        %p322 = scmp.lt.s32.totalorder %s27, 1
        %s323 = scalar_select %p322, %s27, 1
        %s324 = smul.addr %s323, 4
        %s325 = smul.addr %s324, 4
        %s326 = scalar_lea.vmem %s1, %s325
        %p327 = pneg %p81
        %p328 = pneg %p78
        %p329 = scmp.lt.s32.totalorder %s27, 1
        %s330 = scalar_select %p329, %s27, 1
        %s331 = smul.addr %s330, 4
        %s332 = smul.addr %s331, 4
        %s333 = scalar_lea.vmem %s2, %s332
        %p334 = pneg %p107
        %p335 = pneg %p104
        %p336 = scmp.lt.s32.totalorder %s27, 1
        %s337 = scalar_select %p336, %s27, 1
        %s338 = smul.addr %s337, 4
        %s339 = smul.addr %s338, 4
        %s340 = scalar_lea.vmem %s3, %s339
        %p341 = pneg %p133
        %p342 = pneg %p130
        %p343 = scmp.lt.s32.totalorder %s27, 1
        %s344 = scalar_select %p343, %s27, 1
        %s345 = smul.addr %s344, 8
        %s346 = smul.addr %s345, 4
        %s347 = scalar_lea.vmem %s4, %s346
        %p348 = pneg %p159
        %p349 = pneg %p156
        %s350 = sand.u32 %s172, 1
        %s351 = scalar_lea.sflag [#allocation8], %s350
        %s352 = sand.u32 %s172, 1
        %s353 = smul.addr %s352, 8
        %s354 = scalar_lea.vmem [#allocation7], %s353
        %p355 = pneg %p185
        %p356 = pneg %p182
        %p357 = pneg %p211
        %p358 = pneg %p208
        %s359 = smul.u32 2, %s26
        %p360 = scmp.lt.s32.totalorder %s27, 1
        %s361 = scalar_select %p360, %s27, 1
        %s362 = smul.addr %s361, 4
        %s363 = smul.addr %s362, 4
        %s364 = scalar_lea.vmem %s1, %s363
        %p365 = scmp.lt.s32.totalorder %s27, 1
        %s366 = scalar_select %p365, %s27, 1
        %s367 = smul.addr %s366, 4
        %s368 = smul.addr %s367, 4
        %s369 = scalar_lea.vmem %s2, %s368
        %p370 = scmp.lt.s32.totalorder %s27, 1
        %s371 = scalar_select %p370, %s27, 1
        %s372 = smul.addr %s371, 4
        %s373 = smul.addr %s372, 4
        %s374 = scalar_lea.vmem %s3, %s373
        %p375 = scmp.lt.s32.totalorder %s27, 1
        %s376 = scalar_select %p375, %s27, 1
        %s377 = smul.addr %s376, 8
        %s378 = smul.addr %s377, 4
        %s379 = scalar_lea.vmem %s4, %s378
        %s380 = smul.u32 2, %s26
        %p382 = scmp.eq.s32.totalorder %s27, 0
        // Predicated region
        $region53: #{transformer_projector.1} parent=43 // pred_check
          %p383 = pneg %p382
        $region54: #{transformer_projector.1} parent=43 // pred_check_branch
          %385 = sbr.rel (%p383) target = $region56
        $region55: #{transformer_projector.1} parent=43 // pred_region
          %v386 = vld [vmem:[#allocation4] sm:$0xff]
          %v387 = vld [vmem:[#allocation4 + $0x8] sm:$0xff]
          %vm388 = vcmask 261120
          %389 = vst.msk [vmem:[#allocation2] sm:$0xff] %vm388, %v386
          %390 = vst.msk [vmem:[#allocation2 + $0x8] sm:$0xff] %vm388, %v387
        $region56: #{transformer_projector.1} parent=43 // pred_fallthru
          _
        %v391 = vld [vmem:[%s314] sm:$0xff]
        %v392 = vld [vmem:[#allocation2] sm:$0xff]
        %v393 = vld [vmem:[#allocation2 + $0x8] sm:$0xff]
        %v394 = vpack.c.bf16 %v393, %v392
        %v395 = vld [vmem:[%s364] sm:$0xf]
        %v396 = vld [vmem:[%s364 + $0x4] sm:$0xf]
        %v397 = vld [vmem:[%s364 + $0x8] sm:$0xf]
        %v398 = vld [vmem:[%s364 + $0xc] sm:$0xf]
        %v399 = vperm.slane %v391, 0
        %v404 = vunpack.c.l.b16 %v395
        %v405 = vunpack.c.l.b16 %v396
        %v406 = vunpack.c.l.b16 %v397
        %v407 = vunpack.c.l.b16 %v398
        %v408 = vpack.c.b16 %v405, %v404
        %v409 = vpack.c.b16 %v407, %v406
        %vm412 = vcmask 261120
        %v414 = vsel %vm412, %v394, 0
        %416 = vmatpush.bf16.msra.mxu0 0
        %417 = vmatpush.bf16.msra.mxu0 0
        %418 = vmatpush.bf16.msra.mxu0 0
        %419 = vmatpush.bf16.msra.mxu0 0
        %420 = vmatpush.bf16.msra.mxu0 0
        %421 = vmatpush.bf16.msra.mxu0 0
        %422 = vmatpush.bf16.msra.mxu0 %v409
        %423 = vmatpush.bf16.msra.mxu0 %v408
        %424 = vmatmul.bf16.gmra.mxu0 %v414
        %v425 = vpop.f32.mrf.mxu0
        %v426 = vadd.f32 %v399, %v425
        %v427 = vpop.f32.mrf.mxu0
        %v428 = vadd.f32 %v399, %v427
        %429 = vdwg.mxu0
        %v430 = vpack.c.bf16 %v426, %v426
        %v431 = vpack.c.bf16 %v428, %v428
        %v433 = vunpack.c.l.b16 %v430
        %v434 = vpack.c.b16 %v433, %v433
        %435 = vrot.lane.b32.xlu0 %v434, 96
        %v436 = vpop.permute.xlu0 %435
        %vm437 = vcmask 31744
        %v439 = vsel %vm437, %v430, 0
        %v442 = vsel %vm437, %v436, 0
        %444 = vmatpush.bf16.xpose.msra.mxu0 0
        %445 = vmatpush.bf16.xpose.msra.mxu0 0
        %446 = vmatpush.bf16.xpose.msra.mxu0 0
        %447 = vmatpush.bf16.xpose.msra.mxu0 0
        %448 = vmatpush.bf16.xpose.msra.mxu0 0
        %449 = vmatpush.bf16.xpose.msra.mxu0 0
        %450 = vmatpush.bf16.xpose.msra.mxu0 0
        %451 = vmatpush.bf16.xpose.msra.mxu0 %v442
        %452 = vmatmul.bf16.gmra.mxu0 %v439
        %v453 = vpop.f32.mrf.mxu0
        %v454 = vadd.f32 0.0, %v453
        %v455 = vpop.f32.mrf.mxu0
        %456 = vdwg.mxu0
        %v458 = vunpack.c.l.b16 %v431
        %v459 = vpack.c.b16 %v458, %v458
        %460 = vrot.lane.b32.xlu0 %v459, 96
        %v461 = vpop.permute.xlu0 %460
        %v463 = vsel %vm437, %v431, 0
        %v466 = vsel %vm437, %v461, 0
        %468 = vmatpush.bf16.xpose.msra.mxu0 0
        %469 = vmatpush.bf16.xpose.msra.mxu0 0
        %470 = vmatpush.bf16.xpose.msra.mxu0 0
        %471 = vmatpush.bf16.xpose.msra.mxu0 0
        %472 = vmatpush.bf16.xpose.msra.mxu0 0
        %473 = vmatpush.bf16.xpose.msra.mxu0 0
        %474 = vmatpush.bf16.xpose.msra.mxu0 0
        %475 = vmatpush.bf16.xpose.msra.mxu0 %v466
        %476 = vmatmul.bf16.gmra.mxu0 %v463
        %v477 = vpop.f32.mrf.mxu0
        %v478 = vadd.f32 0.0, %v477
        %v479 = vpop.f32.mrf.mxu0
        %480 = vdwg.mxu0
        %vm481 = vcmask 64512
        %v482 = vsel %vm481, %v454, -inf
        %483 = vmax.xlane.f32.xlu0 %v482
        %v484 = vpop.xlane.xlu0 %483
        %v485 = vsel %vm481, %v478, -inf
        %486 = vmax.xlane.f32.xlu0 %v485
        %v487 = vpop.xlane.xlu0 %486
        %v488 = vsub.f32 %v454, %v484
        %v489 = vsub.f32 %v478, %v487
        %v490 = vmul.f32 %v488, 1.442695
        %v491 = vpow.pop %v490
        %v492 = vmul.f32 %v489, 1.442695
        %v493 = vpow.pop %v492
        %v494 = vsel %vm481, %v491, 0.0
        %495 = vadd.xlane.f32.xlu0 %v494
        %v496 = vpop.xlane.xlu0 %495
        %v497 = vsel %vm481, %v493, 0.0
        %498 = vadd.xlane.f32.xlu0 %v497
        %v499 = vpop.xlane.xlu0 %498
        %v500 = vrcp.pop %v496
        %v501 = vrcp.pop %v499
        %v502 = vmul.f32 %v491, %v500
        %v503 = vmul.f32 %v493, %v501
        %v504 = vpack.c.bf16 %v502, %v502
        %v505 = vpack.c.bf16 %v503, %v503
        %506 = vrot.lane.b32.xlu0 %v434, 64
        %v507 = vpop.permute.xlu0 %506
        %v509 = vsel %vm481, %v504, 0
        %vm511 = vcmask 1043456
        %v513 = vsel %vm511, %v507, 0
        %515 = vmatpush.bf16.msra.mxu0 0
        %516 = vmatpush.bf16.msra.mxu0 0
        %517 = vmatpush.bf16.msra.mxu0 0
        %518 = vmatpush.bf16.msra.mxu0 0
        %519 = vmatpush.bf16.msra.mxu0 0
        %520 = vmatpush.bf16.msra.mxu0 0
        %521 = vmatpush.bf16.msra.mxu0 0
        %522 = vmatpush.bf16.msra.mxu0 %v513
        %523 = vmatmul.bf16.gmra.mxu0 %v509
        %v524 = vpop.f32.mrf.mxu0
        %v525 = vadd.f32 0.0, %v524
        %v526 = vpop.f32.mrf.mxu0
        %527 = vdwg.mxu0
        %528 = vrot.lane.b32.xlu0 %v459, 64
        %v529 = vpop.permute.xlu0 %528
        %v531 = vsel %vm481, %v505, 0
        %v534 = vsel %vm511, %v529, 0
        %536 = vmatpush.bf16.msra.mxu0 0
        %537 = vmatpush.bf16.msra.mxu0 0
        %538 = vmatpush.bf16.msra.mxu0 0
        %539 = vmatpush.bf16.msra.mxu0 0
        %540 = vmatpush.bf16.msra.mxu0 0
        %541 = vmatpush.bf16.msra.mxu0 0
        %542 = vmatpush.bf16.msra.mxu0 0
        %543 = vmatpush.bf16.msra.mxu0 %v534
        %544 = vmatmul.bf16.gmra.mxu0 %v531
        %v545 = vpop.f32.mrf.mxu0
        %v546 = vadd.f32 0.0, %v545
        %v547 = vpop.f32.mrf.mxu0
        %548 = vdwg.mxu0
        %v549 = vpack.c.bf16 %v525, %v525
        %v550 = vpack.c.bf16 %v546, %v546
        %vm551 = vcmask 27648
        %552 = vst.msk [vmem:[#allocation3] sm:$0xf] %vm551, %v549
        %553 = vst.msk [vmem:[#allocation3 + $0x4] sm:$0xf] %vm551, %v550
        %554 = vrot.lane.b32.xlu0 %v434, 124
        %v555 = vpop.permute.xlu0 %554
        %556 = vrot.lane.b32.xlu0 %v434, 92
        %v557 = vpop.permute.xlu0 %556
        %v559 = vsel %vm437, %v555, 0
        %v562 = vsel %vm437, %v557, 0
        %564 = vmatpush.bf16.xpose.msra.mxu0 0
        %565 = vmatpush.bf16.xpose.msra.mxu0 0
        %566 = vmatpush.bf16.xpose.msra.mxu0 0
        %567 = vmatpush.bf16.xpose.msra.mxu0 0
        %568 = vmatpush.bf16.xpose.msra.mxu0 0
        %569 = vmatpush.bf16.xpose.msra.mxu0 0
        %570 = vmatpush.bf16.xpose.msra.mxu0 0
        %571 = vmatpush.bf16.xpose.msra.mxu0 %v562
        %572 = vmatmul.bf16.gmra.mxu0 %v559
        %v573 = vpop.f32.mrf.mxu0
        %v574 = vadd.f32 0.0, %v573
        %v575 = vpop.f32.mrf.mxu0
        %576 = vdwg.mxu0
        %577 = vrot.lane.b32.xlu0 %v459, 124
        %v578 = vpop.permute.xlu0 %577
        %579 = vrot.lane.b32.xlu0 %v459, 92
        %v580 = vpop.permute.xlu0 %579
        %v582 = vsel %vm437, %v578, 0
        %v585 = vsel %vm437, %v580, 0
        %587 = vmatpush.bf16.xpose.msra.mxu0 0
        %588 = vmatpush.bf16.xpose.msra.mxu0 0
        %589 = vmatpush.bf16.xpose.msra.mxu0 0
        %590 = vmatpush.bf16.xpose.msra.mxu0 0
        %591 = vmatpush.bf16.xpose.msra.mxu0 0
        %592 = vmatpush.bf16.xpose.msra.mxu0 0
        %593 = vmatpush.bf16.xpose.msra.mxu0 0
        %594 = vmatpush.bf16.xpose.msra.mxu0 %v585
        %595 = vmatmul.bf16.gmra.mxu0 %v582
        %v596 = vpop.f32.mrf.mxu0
        %v597 = vadd.f32 0.0, %v596
        %v598 = vpop.f32.mrf.mxu0
        %599 = vdwg.mxu0
        %v600 = vsel %vm481, %v574, -inf
        %601 = vmax.xlane.f32.xlu0 %v600
        %v602 = vpop.xlane.xlu0 %601
        %v603 = vsel %vm481, %v597, -inf
        %604 = vmax.xlane.f32.xlu0 %v603
        %v605 = vpop.xlane.xlu0 %604
        %v606 = vsub.f32 %v574, %v602
        %v607 = vsub.f32 %v597, %v605
        %v608 = vmul.f32 %v606, 1.442695
        %v609 = vpow.pop %v608
        %v610 = vmul.f32 %v607, 1.442695
        %v611 = vpow.pop %v610
        %v612 = vsel %vm481, %v609, 0.0
        %613 = vadd.xlane.f32.xlu0 %v612
        %v614 = vpop.xlane.xlu0 %613
        %v615 = vsel %vm481, %v611, 0.0
        %616 = vadd.xlane.f32.xlu0 %v615
        %v617 = vpop.xlane.xlu0 %616
        %v618 = vrcp.pop %v614
        %v619 = vrcp.pop %v617
        %v620 = vmul.f32 %v609, %v618
        %v621 = vmul.f32 %v611, %v619
        %v622 = vpack.c.bf16 %v620, %v620
        %v623 = vpack.c.bf16 %v621, %v621
        %624 = vrot.lane.b32.xlu0 %v434, 60
        %v625 = vpop.permute.xlu0 %624
        %v627 = vsel %vm481, %v622, 0
        %v630 = vsel %vm511, %v625, 0
        %632 = vmatpush.bf16.msra.mxu0 0
        %633 = vmatpush.bf16.msra.mxu0 0
        %634 = vmatpush.bf16.msra.mxu0 0
        %635 = vmatpush.bf16.msra.mxu0 0
        %636 = vmatpush.bf16.msra.mxu0 0
        %637 = vmatpush.bf16.msra.mxu0 0
        %638 = vmatpush.bf16.msra.mxu0 0
        %639 = vmatpush.bf16.msra.mxu0 %v630
        %640 = vmatmul.bf16.gmra.mxu0 %v627
        %v641 = vpop.f32.mrf.mxu0
        %v642 = vadd.f32 0.0, %v641
        %v643 = vpop.f32.mrf.mxu0
        %644 = vdwg.mxu0
        %645 = vrot.lane.b32.xlu0 %v459, 60
        %v646 = vpop.permute.xlu0 %645
        %v648 = vsel %vm481, %v623, 0
        %v651 = vsel %vm511, %v646, 0
        %653 = vmatpush.bf16.msra.mxu0 0
        %654 = vmatpush.bf16.msra.mxu0 0
        %655 = vmatpush.bf16.msra.mxu0 0
        %656 = vmatpush.bf16.msra.mxu0 0
        %657 = vmatpush.bf16.msra.mxu0 0
        %658 = vmatpush.bf16.msra.mxu0 0
        %659 = vmatpush.bf16.msra.mxu0 0
        %660 = vmatpush.bf16.msra.mxu0 %v651
        %661 = vmatmul.bf16.gmra.mxu0 %v648
        %v662 = vpop.f32.mrf.mxu0
        %v663 = vadd.f32 0.0, %v662
        %v664 = vpop.f32.mrf.mxu0
        %665 = vdwg.mxu0
        %v666 = vpack.c.bf16 %v642, %v642
        %v667 = vpack.c.bf16 %v663, %v663
        %670 = vrot.lane.b32.xlu0 %v666, 4
        %v671 = vpop.permute.xlu0 %670
        %672 = vrot.lane.b32.xlu0 %v667, 4
        %v673 = vpop.permute.xlu0 %672
        %vm676 = vcmask 60448
        %677 = vst.msk [vmem:[#allocation3] sm:$0xf] %vm676, %v671
        %678 = vst.msk [vmem:[#allocation3 + $0x4] sm:$0xf] %vm676, %v673
        %679 = vrot.lane.b32.xlu0 %v434, 120
        %v680 = vpop.permute.xlu0 %679
        %681 = vrot.lane.b32.xlu0 %v434, 88
        %v682 = vpop.permute.xlu0 %681
        %v684 = vsel %vm437, %v680, 0
        %v687 = vsel %vm437, %v682, 0
        %689 = vmatpush.bf16.xpose.msra.mxu0 0
        %690 = vmatpush.bf16.xpose.msra.mxu0 0
        %691 = vmatpush.bf16.xpose.msra.mxu0 0
        %692 = vmatpush.bf16.xpose.msra.mxu0 0
        %693 = vmatpush.bf16.xpose.msra.mxu0 0
        %694 = vmatpush.bf16.xpose.msra.mxu0 0
        %695 = vmatpush.bf16.xpose.msra.mxu0 0
        %696 = vmatpush.bf16.xpose.msra.mxu0 %v687
        %697 = vmatmul.bf16.gmra.mxu0 %v684
        %v698 = vpop.f32.mrf.mxu0
        %v699 = vadd.f32 0.0, %v698
        %v700 = vpop.f32.mrf.mxu0
        %701 = vdwg.mxu0
        %702 = vrot.lane.b32.xlu0 %v459, 120
        %v703 = vpop.permute.xlu0 %702
        %704 = vrot.lane.b32.xlu0 %v459, 88
        %v705 = vpop.permute.xlu0 %704
        %v707 = vsel %vm437, %v703, 0
        %v710 = vsel %vm437, %v705, 0
        %712 = vmatpush.bf16.xpose.msra.mxu0 0
        %713 = vmatpush.bf16.xpose.msra.mxu0 0
        %714 = vmatpush.bf16.xpose.msra.mxu0 0
        %715 = vmatpush.bf16.xpose.msra.mxu0 0
        %716 = vmatpush.bf16.xpose.msra.mxu0 0
        %717 = vmatpush.bf16.xpose.msra.mxu0 0
        %718 = vmatpush.bf16.xpose.msra.mxu0 0
        %719 = vmatpush.bf16.xpose.msra.mxu0 %v710
        %720 = vmatmul.bf16.gmra.mxu0 %v707
        %v721 = vpop.f32.mrf.mxu0
        %v722 = vadd.f32 0.0, %v721
        %v723 = vpop.f32.mrf.mxu0
        %724 = vdwg.mxu0
        %v725 = vsel %vm481, %v699, -inf
        %726 = vmax.xlane.f32.xlu0 %v725
        %v727 = vpop.xlane.xlu0 %726
        %v728 = vsel %vm481, %v722, -inf
        %729 = vmax.xlane.f32.xlu0 %v728
        %v730 = vpop.xlane.xlu0 %729
        %v731 = vsub.f32 %v699, %v727
        %v732 = vsub.f32 %v722, %v730
        %v733 = vmul.f32 %v731, 1.442695
        %v734 = vpow.pop %v733
        %v735 = vmul.f32 %v732, 1.442695
        %v736 = vpow.pop %v735
        %v737 = vsel %vm481, %v734, 0.0
        %738 = vadd.xlane.f32.xlu0 %v737
        %v739 = vpop.xlane.xlu0 %738
        %v740 = vsel %vm481, %v736, 0.0
        %741 = vadd.xlane.f32.xlu0 %v740
        %v742 = vpop.xlane.xlu0 %741
        %v743 = vrcp.pop %v739
        %v744 = vrcp.pop %v742
        %v745 = vmul.f32 %v734, %v743
        %v746 = vmul.f32 %v736, %v744
        %v747 = vpack.c.bf16 %v745, %v745
        %v748 = vpack.c.bf16 %v746, %v746
        %749 = vrot.lane.b32.xlu0 %v434, 56
        %v750 = vpop.permute.xlu0 %749
        %v752 = vsel %vm481, %v747, 0
        %v755 = vsel %vm511, %v750, 0
        %757 = vmatpush.bf16.msra.mxu0 0
        %758 = vmatpush.bf16.msra.mxu0 0
        %759 = vmatpush.bf16.msra.mxu0 0
        %760 = vmatpush.bf16.msra.mxu0 0
        %761 = vmatpush.bf16.msra.mxu0 0
        %762 = vmatpush.bf16.msra.mxu0 0
        %763 = vmatpush.bf16.msra.mxu0 0
        %764 = vmatpush.bf16.msra.mxu0 %v755
        %765 = vmatmul.bf16.gmra.mxu0 %v752
        %v766 = vpop.f32.mrf.mxu0
        %v767 = vadd.f32 0.0, %v766
        %v768 = vpop.f32.mrf.mxu0
        %769 = vdwg.mxu0
        %770 = vrot.lane.b32.xlu0 %v459, 56
        %v771 = vpop.permute.xlu0 %770
        %v773 = vsel %vm481, %v748, 0
        %v776 = vsel %vm511, %v771, 0
        %778 = vmatpush.bf16.msra.mxu0 0
        %779 = vmatpush.bf16.msra.mxu0 0
        %780 = vmatpush.bf16.msra.mxu0 0
        %781 = vmatpush.bf16.msra.mxu0 0
        %782 = vmatpush.bf16.msra.mxu0 0
        %783 = vmatpush.bf16.msra.mxu0 0
        %784 = vmatpush.bf16.msra.mxu0 0
        %785 = vmatpush.bf16.msra.mxu0 %v776
        %786 = vmatmul.bf16.gmra.mxu0 %v773
        %v787 = vpop.f32.mrf.mxu0
        %v788 = vadd.f32 0.0, %v787
        %v789 = vpop.f32.mrf.mxu0
        %790 = vdwg.mxu0
        %v791 = vpack.c.bf16 %v767, %v767
        %v792 = vpack.c.bf16 %v788, %v788
        %795 = vrot.lane.b32.xlu0 %v791, 8
        %v796 = vpop.permute.xlu0 %795
        %797 = vrot.lane.b32.xlu0 %v792, 8
        %v798 = vpop.permute.xlu0 %797
        %vm801 = vcmask 93248
        %802 = vst.msk [vmem:[#allocation3] sm:$0xf] %vm801, %v796
        %803 = vst.msk [vmem:[#allocation3 + $0x4] sm:$0xf] %vm801, %v798
        %804 = vrot.lane.b32.xlu0 %v434, 116
        %v805 = vpop.permute.xlu0 %804
        %806 = vrot.lane.b32.xlu0 %v434, 84
        %v807 = vpop.permute.xlu0 %806
        %v809 = vsel %vm437, %v805, 0
        %v812 = vsel %vm437, %v807, 0
        %814 = vmatpush.bf16.xpose.msra.mxu0 0
        %815 = vmatpush.bf16.xpose.msra.mxu0 0
        %816 = vmatpush.bf16.xpose.msra.mxu0 0
        %817 = vmatpush.bf16.xpose.msra.mxu0 0
        %818 = vmatpush.bf16.xpose.msra.mxu0 0
        %819 = vmatpush.bf16.xpose.msra.mxu0 0
        %820 = vmatpush.bf16.xpose.msra.mxu0 0
        %821 = vmatpush.bf16.xpose.msra.mxu0 %v812
        %822 = vmatmul.bf16.gmra.mxu0 %v809
        %v823 = vpop.f32.mrf.mxu0
        %v824 = vadd.f32 0.0, %v823
        %v825 = vpop.f32.mrf.mxu0
        %826 = vdwg.mxu0
        %827 = vrot.lane.b32.xlu0 %v459, 116
        %v828 = vpop.permute.xlu0 %827
        %829 = vrot.lane.b32.xlu0 %v459, 84
        %v830 = vpop.permute.xlu0 %829
        %v832 = vsel %vm437, %v828, 0
        %v835 = vsel %vm437, %v830, 0
        %837 = vmatpush.bf16.xpose.msra.mxu0 0
        %838 = vmatpush.bf16.xpose.msra.mxu0 0
        %839 = vmatpush.bf16.xpose.msra.mxu0 0
        %840 = vmatpush.bf16.xpose.msra.mxu0 0
        %841 = vmatpush.bf16.xpose.msra.mxu0 0
        %842 = vmatpush.bf16.xpose.msra.mxu0 0
        %843 = vmatpush.bf16.xpose.msra.mxu0 0
        %844 = vmatpush.bf16.xpose.msra.mxu0 %v835
        %845 = vmatmul.bf16.gmra.mxu0 %v832
        %v846 = vpop.f32.mrf.mxu0
        %v847 = vadd.f32 0.0, %v846
        %v848 = vpop.f32.mrf.mxu0
        %849 = vdwg.mxu0
        %v850 = vsel %vm481, %v824, -inf
        %851 = vmax.xlane.f32.xlu0 %v850
        %v852 = vpop.xlane.xlu0 %851
        %v853 = vsel %vm481, %v847, -inf
        %854 = vmax.xlane.f32.xlu0 %v853
        %v855 = vpop.xlane.xlu0 %854
        %v856 = vsub.f32 %v824, %v852
        %v857 = vsub.f32 %v847, %v855
        %v858 = vmul.f32 %v856, 1.442695
        %v859 = vpow.pop %v858
        %v860 = vmul.f32 %v857, 1.442695
        %v861 = vpow.pop %v860
        %v862 = vsel %vm481, %v859, 0.0
        %863 = vadd.xlane.f32.xlu0 %v862
        %v864 = vpop.xlane.xlu0 %863
        %v865 = vsel %vm481, %v861, 0.0
        %866 = vadd.xlane.f32.xlu0 %v865
        %v867 = vpop.xlane.xlu0 %866
        %v868 = vrcp.pop %v864
        %v869 = vrcp.pop %v867
        %v870 = vmul.f32 %v859, %v868
        %v871 = vmul.f32 %v861, %v869
        %v872 = vpack.c.bf16 %v870, %v870
        %v873 = vpack.c.bf16 %v871, %v871
        %874 = vrot.lane.b32.xlu0 %v434, 52
        %v875 = vpop.permute.xlu0 %874
        %v877 = vsel %vm481, %v872, 0
        %v880 = vsel %vm511, %v875, 0
        %882 = vmatpush.bf16.msra.mxu0 0
        %883 = vmatpush.bf16.msra.mxu0 0
        %884 = vmatpush.bf16.msra.mxu0 0
        %885 = vmatpush.bf16.msra.mxu0 0
        %886 = vmatpush.bf16.msra.mxu0 0
        %887 = vmatpush.bf16.msra.mxu0 0
        %888 = vmatpush.bf16.msra.mxu0 0
        %889 = vmatpush.bf16.msra.mxu0 %v880
        %890 = vmatmul.bf16.gmra.mxu0 %v877
        %v891 = vpop.f32.mrf.mxu0
        %v892 = vadd.f32 0.0, %v891
        %v893 = vpop.f32.mrf.mxu0
        %894 = vdwg.mxu0
        %895 = vrot.lane.b32.xlu0 %v459, 52
        %v896 = vpop.permute.xlu0 %895
        %v898 = vsel %vm481, %v873, 0
        %v901 = vsel %vm511, %v896, 0
        %903 = vmatpush.bf16.msra.mxu0 0
        %904 = vmatpush.bf16.msra.mxu0 0
        %905 = vmatpush.bf16.msra.mxu0 0
        %906 = vmatpush.bf16.msra.mxu0 0
        %907 = vmatpush.bf16.msra.mxu0 0
        %908 = vmatpush.bf16.msra.mxu0 0
        %909 = vmatpush.bf16.msra.mxu0 0
        %910 = vmatpush.bf16.msra.mxu0 %v901
        %911 = vmatmul.bf16.gmra.mxu0 %v898
        %v912 = vpop.f32.mrf.mxu0
        %v913 = vadd.f32 0.0, %v912
        %v914 = vpop.f32.mrf.mxu0
        %915 = vdwg.mxu0
        %v916 = vpack.c.bf16 %v892, %v892
        %v917 = vpack.c.bf16 %v913, %v913
        %920 = vrot.lane.b32.xlu0 %v916, 12
        %v921 = vpop.permute.xlu0 %920
        %922 = vrot.lane.b32.xlu0 %v917, 12
        %v923 = vpop.permute.xlu0 %922
        %vm926 = vcmask 126048
        %927 = vst.msk [vmem:[#allocation3] sm:$0xf] %vm926, %v921
        %928 = vst.msk [vmem:[#allocation3 + $0x4] sm:$0xf] %vm926, %v923
        %929 = vrot.lane.b32.xlu0 %v434, 112
        %v930 = vpop.permute.xlu0 %929
        %931 = vrot.lane.b32.xlu0 %v434, 80
        %v932 = vpop.permute.xlu0 %931
        %v934 = vsel %vm437, %v930, 0
        %v937 = vsel %vm437, %v932, 0
        %939 = vmatpush.bf16.xpose.msra.mxu0 0
        %940 = vmatpush.bf16.xpose.msra.mxu0 0
        %941 = vmatpush.bf16.xpose.msra.mxu0 0
        %942 = vmatpush.bf16.xpose.msra.mxu0 0
        %943 = vmatpush.bf16.xpose.msra.mxu0 0
        %944 = vmatpush.bf16.xpose.msra.mxu0 0
        %945 = vmatpush.bf16.xpose.msra.mxu0 0
        %946 = vmatpush.bf16.xpose.msra.mxu0 %v937
        %947 = vmatmul.bf16.gmra.mxu0 %v934
        %v948 = vpop.f32.mrf.mxu0
        %v949 = vadd.f32 0.0, %v948
        %v950 = vpop.f32.mrf.mxu0
        %951 = vdwg.mxu0
        %952 = vrot.lane.b32.xlu0 %v459, 112
        %v953 = vpop.permute.xlu0 %952
        %954 = vrot.lane.b32.xlu0 %v459, 80
        %v955 = vpop.permute.xlu0 %954
        %v957 = vsel %vm437, %v953, 0
        %v960 = vsel %vm437, %v955, 0
        %962 = vmatpush.bf16.xpose.msra.mxu0 0
        %963 = vmatpush.bf16.xpose.msra.mxu0 0
        %964 = vmatpush.bf16.xpose.msra.mxu0 0
        %965 = vmatpush.bf16.xpose.msra.mxu0 0
        %966 = vmatpush.bf16.xpose.msra.mxu0 0
        %967 = vmatpush.bf16.xpose.msra.mxu0 0
        %968 = vmatpush.bf16.xpose.msra.mxu0 0
        %969 = vmatpush.bf16.xpose.msra.mxu0 %v960
        %970 = vmatmul.bf16.gmra.mxu0 %v957
        %v971 = vpop.f32.mrf.mxu0
        %v972 = vadd.f32 0.0, %v971
        %v973 = vpop.f32.mrf.mxu0
        %974 = vdwg.mxu0
        %v975 = vsel %vm481, %v949, -inf
        %976 = vmax.xlane.f32.xlu0 %v975
        %v977 = vpop.xlane.xlu0 %976
        %v978 = vsel %vm481, %v972, -inf
        %979 = vmax.xlane.f32.xlu0 %v978
        %v980 = vpop.xlane.xlu0 %979
        %v981 = vsub.f32 %v949, %v977
        %v982 = vsub.f32 %v972, %v980
        %v983 = vmul.f32 %v981, 1.442695
        %v984 = vpow.pop %v983
        %v985 = vmul.f32 %v982, 1.442695
        %v986 = vpow.pop %v985
        %v987 = vsel %vm481, %v984, 0.0
        %988 = vadd.xlane.f32.xlu0 %v987
        %v989 = vpop.xlane.xlu0 %988
        %v990 = vsel %vm481, %v986, 0.0
        %991 = vadd.xlane.f32.xlu0 %v990
        %v992 = vpop.xlane.xlu0 %991
        %v993 = vrcp.pop %v989
        %v994 = vrcp.pop %v992
        %v995 = vmul.f32 %v984, %v993
        %v996 = vmul.f32 %v986, %v994
        %v997 = vpack.c.bf16 %v995, %v995
        %v998 = vpack.c.bf16 %v996, %v996
        %999 = vrot.lane.b32.xlu0 %v434, 48
        %v1000 = vpop.permute.xlu0 %999
        %v1002 = vsel %vm481, %v997, 0
        %v1005 = vsel %vm511, %v1000, 0
        %1007 = vmatpush.bf16.msra.mxu0 0
        %1008 = vmatpush.bf16.msra.mxu0 0
        %1009 = vmatpush.bf16.msra.mxu0 0
        %1010 = vmatpush.bf16.msra.mxu0 0
        %1011 = vmatpush.bf16.msra.mxu0 0
        %1012 = vmatpush.bf16.msra.mxu0 0
        %1013 = vmatpush.bf16.msra.mxu0 0
        %1014 = vmatpush.bf16.msra.mxu0 %v1005
        %1015 = vmatmul.bf16.gmra.mxu0 %v1002
        %v1016 = vpop.f32.mrf.mxu0
        %v1017 = vadd.f32 0.0, %v1016
        %v1018 = vpop.f32.mrf.mxu0
        %1019 = vdwg.mxu0
        %1020 = vrot.lane.b32.xlu0 %v459, 48
        %v1021 = vpop.permute.xlu0 %1020
        %v1023 = vsel %vm481, %v998, 0
        %v1026 = vsel %vm511, %v1021, 0
        %1028 = vmatpush.bf16.msra.mxu0 0
        %1029 = vmatpush.bf16.msra.mxu0 0
        %1030 = vmatpush.bf16.msra.mxu0 0
        %1031 = vmatpush.bf16.msra.mxu0 0
        %1032 = vmatpush.bf16.msra.mxu0 0
        %1033 = vmatpush.bf16.msra.mxu0 0
        %1034 = vmatpush.bf16.msra.mxu0 0
        %1035 = vmatpush.bf16.msra.mxu0 %v1026
        %1036 = vmatmul.bf16.gmra.mxu0 %v1023
        %v1037 = vpop.f32.mrf.mxu0
        %v1038 = vadd.f32 0.0, %v1037
        %v1039 = vpop.f32.mrf.mxu0
        %1040 = vdwg.mxu0
        %v1041 = vpack.c.bf16 %v1017, %v1017
        %v1042 = vpack.c.bf16 %v1038, %v1038
        %1045 = vrot.lane.b32.xlu0 %v1041, 16
        %v1046 = vpop.permute.xlu0 %1045
        %1047 = vrot.lane.b32.xlu0 %v1042, 16
        %v1048 = vpop.permute.xlu0 %1047
        %vm1051 = vcmask 158848
        %1052 = vst.msk [vmem:[#allocation3] sm:$0xf] %vm1051, %v1046
        %1053 = vst.msk [vmem:[#allocation3 + $0x4] sm:$0xf] %vm1051, %v1048
        %1054 = vrot.lane.b32.xlu0 %v434, 108
        %v1055 = vpop.permute.xlu0 %1054
        %1056 = vrot.lane.b32.xlu0 %v434, 76
        %v1057 = vpop.permute.xlu0 %1056
        %v1059 = vsel %vm437, %v1055, 0
        %v1062 = vsel %vm437, %v1057, 0
        %1064 = vmatpush.bf16.xpose.msra.mxu0 0
        %1065 = vmatpush.bf16.xpose.msra.mxu0 0
        %1066 = vmatpush.bf16.xpose.msra.mxu0 0
        %1067 = vmatpush.bf16.xpose.msra.mxu0 0
        %1068 = vmatpush.bf16.xpose.msra.mxu0 0
        %1069 = vmatpush.bf16.xpose.msra.mxu0 0
        %1070 = vmatpush.bf16.xpose.msra.mxu0 0
        %1071 = vmatpush.bf16.xpose.msra.mxu0 %v1062
        %1072 = vmatmul.bf16.gmra.mxu0 %v1059
        %v1073 = vpop.f32.mrf.mxu0
        %v1074 = vadd.f32 0.0, %v1073
        %v1075 = vpop.f32.mrf.mxu0
        %1076 = vdwg.mxu0
        %1077 = vrot.lane.b32.xlu0 %v459, 108
        %v1078 = vpop.permute.xlu0 %1077
        %1079 = vrot.lane.b32.xlu0 %v459, 76
        %v1080 = vpop.permute.xlu0 %1079
        %v1082 = vsel %vm437, %v1078, 0
        %v1085 = vsel %vm437, %v1080, 0
        %1087 = vmatpush.bf16.xpose.msra.mxu0 0
        %1088 = vmatpush.bf16.xpose.msra.mxu0 0
        %1089 = vmatpush.bf16.xpose.msra.mxu0 0
        %1090 = vmatpush.bf16.xpose.msra.mxu0 0
        %1091 = vmatpush.bf16.xpose.msra.mxu0 0
        %1092 = vmatpush.bf16.xpose.msra.mxu0 0
        %1093 = vmatpush.bf16.xpose.msra.mxu0 0
        %1094 = vmatpush.bf16.xpose.msra.mxu0 %v1085
        %1095 = vmatmul.bf16.gmra.mxu0 %v1082
        %v1096 = vpop.f32.mrf.mxu0
        %v1097 = vadd.f32 0.0, %v1096
        %v1098 = vpop.f32.mrf.mxu0
        %1099 = vdwg.mxu0
        %v1100 = vsel %vm481, %v1074, -inf
        %1101 = vmax.xlane.f32.xlu0 %v1100
        %v1102 = vpop.xlane.xlu0 %1101
        %v1103 = vsel %vm481, %v1097, -inf
        %1104 = vmax.xlane.f32.xlu0 %v1103
        %v1105 = vpop.xlane.xlu0 %1104
        %v1106 = vsub.f32 %v1074, %v1102
        %v1107 = vsub.f32 %v1097, %v1105
        %v1108 = vmul.f32 %v1106, 1.442695
        %v1109 = vpow.pop %v1108
        %v1110 = vmul.f32 %v1107, 1.442695
        %v1111 = vpow.pop %v1110
        %v1112 = vsel %vm481, %v1109, 0.0
        %1113 = vadd.xlane.f32.xlu0 %v1112
        %v1114 = vpop.xlane.xlu0 %1113
        %v1115 = vsel %vm481, %v1111, 0.0
        %1116 = vadd.xlane.f32.xlu0 %v1115
        %v1117 = vpop.xlane.xlu0 %1116
        %v1118 = vrcp.pop %v1114
        %v1119 = vrcp.pop %v1117
        %v1120 = vmul.f32 %v1109, %v1118
        %v1121 = vmul.f32 %v1111, %v1119
        %v1122 = vpack.c.bf16 %v1120, %v1120
        %v1123 = vpack.c.bf16 %v1121, %v1121
        %1124 = vrot.lane.b32.xlu0 %v434, 44
        %v1125 = vpop.permute.xlu0 %1124
        %v1127 = vsel %vm481, %v1122, 0
        %v1130 = vsel %vm511, %v1125, 0
        %1132 = vmatpush.bf16.msra.mxu0 0
        %1133 = vmatpush.bf16.msra.mxu0 0
        %1134 = vmatpush.bf16.msra.mxu0 0
        %1135 = vmatpush.bf16.msra.mxu0 0
        %1136 = vmatpush.bf16.msra.mxu0 0
        %1137 = vmatpush.bf16.msra.mxu0 0
        %1138 = vmatpush.bf16.msra.mxu0 0
        %1139 = vmatpush.bf16.msra.mxu0 %v1130
        %1140 = vmatmul.bf16.gmra.mxu0 %v1127
        %v1141 = vpop.f32.mrf.mxu0
        %v1142 = vadd.f32 0.0, %v1141
        %v1143 = vpop.f32.mrf.mxu0
        %1144 = vdwg.mxu0
        %1145 = vrot.lane.b32.xlu0 %v459, 44
        %v1146 = vpop.permute.xlu0 %1145
        %v1148 = vsel %vm481, %v1123, 0
        %v1151 = vsel %vm511, %v1146, 0
        %1153 = vmatpush.bf16.msra.mxu0 0
        %1154 = vmatpush.bf16.msra.mxu0 0
        %1155 = vmatpush.bf16.msra.mxu0 0
        %1156 = vmatpush.bf16.msra.mxu0 0
        %1157 = vmatpush.bf16.msra.mxu0 0
        %1158 = vmatpush.bf16.msra.mxu0 0
        %1159 = vmatpush.bf16.msra.mxu0 0
        %1160 = vmatpush.bf16.msra.mxu0 %v1151
        %1161 = vmatmul.bf16.gmra.mxu0 %v1148
        %v1162 = vpop.f32.mrf.mxu0
        %v1163 = vadd.f32 0.0, %v1162
        %v1164 = vpop.f32.mrf.mxu0
        %1165 = vdwg.mxu0
        %v1166 = vpack.c.bf16 %v1142, %v1142
        %v1167 = vpack.c.bf16 %v1163, %v1163
        %1170 = vrot.lane.b32.xlu0 %v1166, 20
        %v1171 = vpop.permute.xlu0 %1170
        %1172 = vrot.lane.b32.xlu0 %v1167, 20
        %v1173 = vpop.permute.xlu0 %1172
        %vm1176 = vcmask 191648
        %1177 = vst.msk [vmem:[#allocation3] sm:$0xf] %vm1176, %v1171
        %1178 = vst.msk [vmem:[#allocation3 + $0x4] sm:$0xf] %vm1176, %v1173
        %1179 = vrot.lane.b32.xlu0 %v434, 104
        %v1180 = vpop.permute.xlu0 %1179
        %1181 = vrot.lane.b32.xlu0 %v434, 72
        %v1182 = vpop.permute.xlu0 %1181
        %v1184 = vsel %vm437, %v1180, 0
        %v1187 = vsel %vm437, %v1182, 0
        %1189 = vmatpush.bf16.xpose.msra.mxu0 0
        %1190 = vmatpush.bf16.xpose.msra.mxu0 0
        %1191 = vmatpush.bf16.xpose.msra.mxu0 0
        %1192 = vmatpush.bf16.xpose.msra.mxu0 0
        %1193 = vmatpush.bf16.xpose.msra.mxu0 0
        %1194 = vmatpush.bf16.xpose.msra.mxu0 0
        %1195 = vmatpush.bf16.xpose.msra.mxu0 0
        %1196 = vmatpush.bf16.xpose.msra.mxu0 %v1187
        %1197 = vmatmul.bf16.gmra.mxu0 %v1184
        %v1198 = vpop.f32.mrf.mxu0
        %v1199 = vadd.f32 0.0, %v1198
        %v1200 = vpop.f32.mrf.mxu0
        %1201 = vdwg.mxu0
        %1202 = vrot.lane.b32.xlu0 %v459, 104
        %v1203 = vpop.permute.xlu0 %1202
        %1204 = vrot.lane.b32.xlu0 %v459, 72
        %v1205 = vpop.permute.xlu0 %1204
        %v1207 = vsel %vm437, %v1203, 0
        %v1210 = vsel %vm437, %v1205, 0
        %1212 = vmatpush.bf16.xpose.msra.mxu0 0
        %1213 = vmatpush.bf16.xpose.msra.mxu0 0
        %1214 = vmatpush.bf16.xpose.msra.mxu0 0
        %1215 = vmatpush.bf16.xpose.msra.mxu0 0
        %1216 = vmatpush.bf16.xpose.msra.mxu0 0
        %1217 = vmatpush.bf16.xpose.msra.mxu0 0
        %1218 = vmatpush.bf16.xpose.msra.mxu0 0
        %1219 = vmatpush.bf16.xpose.msra.mxu0 %v1210
        %1220 = vmatmul.bf16.gmra.mxu0 %v1207
        %v1221 = vpop.f32.mrf.mxu0
        %v1222 = vadd.f32 0.0, %v1221
        %v1223 = vpop.f32.mrf.mxu0
        %1224 = vdwg.mxu0
        %v1225 = vsel %vm481, %v1199, -inf
        %1226 = vmax.xlane.f32.xlu0 %v1225
        %v1227 = vpop.xlane.xlu0 %1226
        %v1228 = vsel %vm481, %v1222, -inf
        %1229 = vmax.xlane.f32.xlu0 %v1228
        %v1230 = vpop.xlane.xlu0 %1229
        %v1231 = vsub.f32 %v1199, %v1227
        %v1232 = vsub.f32 %v1222, %v1230
        %v1233 = vmul.f32 %v1231, 1.442695
        %v1234 = vpow.pop %v1233
        %v1235 = vmul.f32 %v1232, 1.442695
        %v1236 = vpow.pop %v1235
        %v1237 = vsel %vm481, %v1234, 0.0
        %1238 = vadd.xlane.f32.xlu0 %v1237
        %v1239 = vpop.xlane.xlu0 %1238
        %v1240 = vsel %vm481, %v1236, 0.0
        %1241 = vadd.xlane.f32.xlu0 %v1240
        %v1242 = vpop.xlane.xlu0 %1241
        %v1243 = vrcp.pop %v1239
        %v1244 = vrcp.pop %v1242
        %v1245 = vmul.f32 %v1234, %v1243
        %v1246 = vmul.f32 %v1236, %v1244
        %v1247 = vpack.c.bf16 %v1245, %v1245
        %v1248 = vpack.c.bf16 %v1246, %v1246
        %1249 = vrot.lane.b32.xlu0 %v434, 40
        %v1250 = vpop.permute.xlu0 %1249
        %v1252 = vsel %vm481, %v1247, 0
        %v1255 = vsel %vm511, %v1250, 0
        %1257 = vmatpush.bf16.msra.mxu0 0
        %1258 = vmatpush.bf16.msra.mxu0 0
        %1259 = vmatpush.bf16.msra.mxu0 0
        %1260 = vmatpush.bf16.msra.mxu0 0
        %1261 = vmatpush.bf16.msra.mxu0 0
        %1262 = vmatpush.bf16.msra.mxu0 0
        %1263 = vmatpush.bf16.msra.mxu0 0
        %1264 = vmatpush.bf16.msra.mxu0 %v1255
        %1265 = vmatmul.bf16.gmra.mxu0 %v1252
        %v1266 = vpop.f32.mrf.mxu0
        %v1267 = vadd.f32 0.0, %v1266
        %v1268 = vpop.f32.mrf.mxu0
        %1269 = vdwg.mxu0
        %1270 = vrot.lane.b32.xlu0 %v459, 40
        %v1271 = vpop.permute.xlu0 %1270
        %v1273 = vsel %vm481, %v1248, 0
        %v1276 = vsel %vm511, %v1271, 0
        %1278 = vmatpush.bf16.msra.mxu0 0
        %1279 = vmatpush.bf16.msra.mxu0 0
        %1280 = vmatpush.bf16.msra.mxu0 0
        %1281 = vmatpush.bf16.msra.mxu0 0
        %1282 = vmatpush.bf16.msra.mxu0 0
        %1283 = vmatpush.bf16.msra.mxu0 0
        %1284 = vmatpush.bf16.msra.mxu0 0
        %1285 = vmatpush.bf16.msra.mxu0 %v1276
        %1286 = vmatmul.bf16.gmra.mxu0 %v1273
        %v1287 = vpop.f32.mrf.mxu0
        %v1288 = vadd.f32 0.0, %v1287
        %v1289 = vpop.f32.mrf.mxu0
        %1290 = vdwg.mxu0
        %v1291 = vpack.c.bf16 %v1267, %v1267
        %v1292 = vpack.c.bf16 %v1288, %v1288
        %1295 = vrot.lane.b32.xlu0 %v1291, 24
        %v1296 = vpop.permute.xlu0 %1295
        %1297 = vrot.lane.b32.xlu0 %v1292, 24
        %v1298 = vpop.permute.xlu0 %1297
        %vm1301 = vcmask 224448
        %1302 = vst.msk [vmem:[#allocation3] sm:$0xf] %vm1301, %v1296
        %1303 = vst.msk [vmem:[#allocation3 + $0x4] sm:$0xf] %vm1301, %v1298
        %1304 = vrot.lane.b32.xlu0 %v434, 100
        %v1305 = vpop.permute.xlu0 %1304
        %1306 = vrot.lane.b32.xlu0 %v434, 68
        %v1307 = vpop.permute.xlu0 %1306
        %v1309 = vsel %vm437, %v1305, 0
        %v1312 = vsel %vm437, %v1307, 0
        %1314 = vmatpush.bf16.xpose.msra.mxu0 0
        %1315 = vmatpush.bf16.xpose.msra.mxu0 0
        %1316 = vmatpush.bf16.xpose.msra.mxu0 0
        %1317 = vmatpush.bf16.xpose.msra.mxu0 0
        %1318 = vmatpush.bf16.xpose.msra.mxu0 0
        %1319 = vmatpush.bf16.xpose.msra.mxu0 0
        %1320 = vmatpush.bf16.xpose.msra.mxu0 0
        %1321 = vmatpush.bf16.xpose.msra.mxu0 %v1312
        %1322 = vmatmul.bf16.gmra.mxu0 %v1309
        %v1323 = vpop.f32.mrf.mxu0
        %v1324 = vadd.f32 0.0, %v1323
        %v1325 = vpop.f32.mrf.mxu0
        %1326 = vdwg.mxu0
        %1327 = vrot.lane.b32.xlu0 %v459, 100
        %v1328 = vpop.permute.xlu0 %1327
        %1329 = vrot.lane.b32.xlu0 %v459, 68
        %v1330 = vpop.permute.xlu0 %1329
        %v1332 = vsel %vm437, %v1328, 0
        %v1335 = vsel %vm437, %v1330, 0
        %1337 = vmatpush.bf16.xpose.msra.mxu0 0
        %1338 = vmatpush.bf16.xpose.msra.mxu0 0
        %1339 = vmatpush.bf16.xpose.msra.mxu0 0
        %1340 = vmatpush.bf16.xpose.msra.mxu0 0
        %1341 = vmatpush.bf16.xpose.msra.mxu0 0
        %1342 = vmatpush.bf16.xpose.msra.mxu0 0
        %1343 = vmatpush.bf16.xpose.msra.mxu0 0
        %1344 = vmatpush.bf16.xpose.msra.mxu0 %v1335
        %1345 = vmatmul.bf16.gmra.mxu0 %v1332
        %v1346 = vpop.f32.mrf.mxu0
        %v1347 = vadd.f32 0.0, %v1346
        %v1348 = vpop.f32.mrf.mxu0
        %1349 = vdwg.mxu0
        %v1350 = vsel %vm481, %v1324, -inf
        %1351 = vmax.xlane.f32.xlu0 %v1350
        %v1352 = vpop.xlane.xlu0 %1351
        %v1353 = vsel %vm481, %v1347, -inf
        %1354 = vmax.xlane.f32.xlu0 %v1353
        %v1355 = vpop.xlane.xlu0 %1354
        %v1356 = vsub.f32 %v1324, %v1352
        %v1357 = vsub.f32 %v1347, %v1355
        %v1358 = vmul.f32 %v1356, 1.442695
        %v1359 = vpow.pop %v1358
        %v1360 = vmul.f32 %v1357, 1.442695
        %v1361 = vpow.pop %v1360
        %v1362 = vsel %vm481, %v1359, 0.0
        %1363 = vadd.xlane.f32.xlu0 %v1362
        %v1364 = vpop.xlane.xlu0 %1363
        %v1365 = vsel %vm481, %v1361, 0.0
        %1366 = vadd.xlane.f32.xlu0 %v1365
        %v1367 = vpop.xlane.xlu0 %1366
        %v1368 = vrcp.pop %v1364
        %v1369 = vrcp.pop %v1367
        %v1370 = vmul.f32 %v1359, %v1368
        %v1371 = vmul.f32 %v1361, %v1369
        %v1372 = vpack.c.bf16 %v1370, %v1370
        %v1373 = vpack.c.bf16 %v1371, %v1371
        %1374 = vrot.lane.b32.xlu0 %v434, 36
        %v1375 = vpop.permute.xlu0 %1374
        %v1377 = vsel %vm481, %v1372, 0
        %v1380 = vsel %vm511, %v1375, 0
        %1382 = vmatpush.bf16.msra.mxu0 0
        %1383 = vmatpush.bf16.msra.mxu0 0
        %1384 = vmatpush.bf16.msra.mxu0 0
        %1385 = vmatpush.bf16.msra.mxu0 0
        %1386 = vmatpush.bf16.msra.mxu0 0
        %1387 = vmatpush.bf16.msra.mxu0 0
        %1388 = vmatpush.bf16.msra.mxu0 0
        %1389 = vmatpush.bf16.msra.mxu0 %v1380
        %1390 = vmatmul.bf16.gmra.mxu0 %v1377
        %v1391 = vpop.f32.mrf.mxu0
        %v1392 = vadd.f32 0.0, %v1391
        %v1393 = vpop.f32.mrf.mxu0
        %1394 = vdwg.mxu0
        %1395 = vrot.lane.b32.xlu0 %v459, 36
        %v1396 = vpop.permute.xlu0 %1395
        %v1398 = vsel %vm481, %v1373, 0
        %v1401 = vsel %vm511, %v1396, 0
        %1403 = vmatpush.bf16.msra.mxu0 0
        %1404 = vmatpush.bf16.msra.mxu0 0
        %1405 = vmatpush.bf16.msra.mxu0 0
        %1406 = vmatpush.bf16.msra.mxu0 0
        %1407 = vmatpush.bf16.msra.mxu0 0
        %1408 = vmatpush.bf16.msra.mxu0 0
        %1409 = vmatpush.bf16.msra.mxu0 0
        %1410 = vmatpush.bf16.msra.mxu0 %v1401
        %1411 = vmatmul.bf16.gmra.mxu0 %v1398
        %v1412 = vpop.f32.mrf.mxu0
        %v1413 = vadd.f32 0.0, %v1412
        %v1414 = vpop.f32.mrf.mxu0
        %1415 = vdwg.mxu0
        %v1416 = vpack.c.bf16 %v1392, %v1392
        %v1417 = vpack.c.bf16 %v1413, %v1413
        %1420 = vrot.lane.b32.xlu0 %v1416, 28
        %v1421 = vpop.permute.xlu0 %1420
        %1422 = vrot.lane.b32.xlu0 %v1417, 28
        %v1423 = vpop.permute.xlu0 %1422
        %vm1426 = vcmask 257248
        %1427 = vst.msk [vmem:[#allocation3] sm:$0xf] %vm1426, %v1421
        %1428 = vst.msk [vmem:[#allocation3 + $0x4] sm:$0xf] %vm1426, %v1423
        %v1429 = vld [vmem:[#allocation3] sm:$0xf]
        %v1430 = vld [vmem:[#allocation3 + $0x4] sm:$0xf]
        %v1431 = vld [vmem:[%s369] sm:$0xf]
        %v1432 = vld [vmem:[%s369 + $0x4] sm:$0xf]
        %v1433 = vld [vmem:[%s369 + $0x8] sm:$0xf]
        %v1434 = vld [vmem:[%s369 + $0xc] sm:$0xf]
        %v1435 = vperm.slane %v391, 1
        %v1438 = vunpack.c.l.b16 %v1429
        %v1439 = vunpack.c.l.b16 %v1430
        %v1440 = vpack.c.b16 %v1439, %v1438
        %v1445 = vunpack.c.l.b16 %v1431
        %v1446 = vunpack.c.l.b16 %v1432
        %v1447 = vunpack.c.l.b16 %v1433
        %v1448 = vunpack.c.l.b16 %v1434
        %v1449 = vpack.c.b16 %v1446, %v1445
        %v1450 = vpack.c.b16 %v1448, %v1447
        %v1454 = vsel %vm412, %v1440, 0
        %1456 = vmatpush.bf16.msra.mxu0 0
        %1457 = vmatpush.bf16.msra.mxu0 0
        %1458 = vmatpush.bf16.msra.mxu0 0
        %1459 = vmatpush.bf16.msra.mxu0 0
        %1460 = vmatpush.bf16.msra.mxu0 0
        %1461 = vmatpush.bf16.msra.mxu0 0
        %1462 = vmatpush.bf16.msra.mxu0 %v1450
        %1463 = vmatpush.bf16.msra.mxu0 %v1449
        %1464 = vmatmul.bf16.gmra.mxu0 %v1454
        %v1465 = vpop.f32.mrf.mxu0
        %v1466 = vadd.f32 %v1435, %v1465
        %v1467 = vpop.f32.mrf.mxu0
        %v1468 = vadd.f32 %v1435, %v1467
        %1469 = vdwg.mxu0
        %v1470 = vadd.f32 %v392, %v1466
        %v1471 = vadd.f32 %v393, %v1468
        %v1472 = vsel %vm412, %v1470, 0.0
        %1473 = vadd.xlane.f32.xlu0 %v1472
        %v1474 = vpop.xlane.xlu0 %1473
        %v1475 = vsel %vm412, %v1471, 0.0
        %1476 = vadd.xlane.f32.xlu0 %v1475
        %v1477 = vpop.xlane.xlu0 %1476
        %v1478 = vrcp.pop 32.0
        %v1479 = vmul.f32 32.0, %v1478
        %v1480 = vsub.f32 1.0, %v1479
        %v1481 = vmul.f32 %v1478, %v1480
        %v1482 = vadd.f32 %v1478, %v1481
        %vm1483 = vweird.f32 %v1478
        %v1484 = vsel %vm1483, %v1478, %v1482
        %v1485 = vmul.f32 %v1474, %v1484
        %v1486 = vmul.f32 %v1477, %v1484
        %v1487 = vsub.f32 %v1470, %v1485
        %v1488 = vsub.f32 %v1471, %v1486
        %v1489 = vmul.f32 %v1487, %v1487
        %v1490 = vmul.f32 %v1488, %v1488
        %v1491 = vsel %vm412, %v1489, 0.0
        %1492 = vadd.xlane.f32.xlu0 %v1491
        %v1493 = vpop.xlane.xlu0 %1492
        %v1494 = vsel %vm412, %v1490, 0.0
        %1495 = vadd.xlane.f32.xlu0 %v1494
        %v1496 = vpop.xlane.xlu0 %1495
        %v1497 = vmul.f32 %v1493, %v1484
        %v1498 = vmul.f32 %v1496, %v1484
        %v1499 = vadd.f32 %v1497, 1e-05
        %v1500 = vadd.f32 %v1498, 1e-05
        %v1501 = vrsqrt.pop %v1499
        %v1502 = vmul.f32 %v1501, %v1499
        %v1503 = vmul.f32 %v1502, %v1501
        %v1504 = vmul.f32 0.5, %v1503
        %v1505 = vsub.f32 1.5, %v1504
        %v1506 = vmul.f32 %v1501, %v1505
        %vm1507 = vweird.f32 %v1499
        %vm1508 = vweird.f32 %v1501
        %vm1509 = vmor %vm1507, %vm1508
        %v1510 = vsel %vm1509, %v1501, %v1506
        %v1511 = vrsqrt.pop %v1500
        %v1512 = vmul.f32 %v1511, %v1500
        %v1513 = vmul.f32 %v1512, %v1511
        %v1514 = vmul.f32 0.5, %v1513
        %v1515 = vsub.f32 1.5, %v1514
        %v1516 = vmul.f32 %v1511, %v1515
        %vm1517 = vweird.f32 %v1500
        %vm1518 = vweird.f32 %v1511
        %vm1519 = vmor %vm1517, %vm1518
        %v1520 = vsel %vm1519, %v1511, %v1516
        %v1521 = vmul.f32 %v1487, %v1510
        %v1522 = vmul.f32 %v1488, %v1520
        %v1523 = vperm.slane %v391, 4
        %v1524 = vmul.f32 %v1521, %v1523
        %v1525 = vmul.f32 %v1522, %v1523
        %v1526 = vperm.slane %v391, 5
        %v1527 = vadd.f32 %v1524, %v1526
        %v1528 = vadd.f32 %v1525, %v1526
        %v1529 = vpack.c.bf16 %v1528, %v1527
        %v1530 = vld [vmem:[%s374] sm:$0xf]
        %v1531 = vld [vmem:[%s374 + $0x4] sm:$0xf]
        %v1532 = vld [vmem:[%s374 + $0x8] sm:$0xf]
        %v1533 = vld [vmem:[%s374 + $0xc] sm:$0xf]
        %v1534 = vperm.slane %v391, 2
        %v1539 = vunpack.c.l.b16 %v1530
        %v1540 = vunpack.c.l.b16 %v1531
        %v1541 = vunpack.c.l.b16 %v1532
        %v1542 = vunpack.c.l.b16 %v1533
        %v1543 = vpack.c.b16 %v1540, %v1539
        %v1544 = vpack.c.b16 %v1542, %v1541
        %v1548 = vsel %vm412, %v1529, 0
        %1550 = vmatpush.bf16.msra.mxu0 0
        %1551 = vmatpush.bf16.msra.mxu0 0
        %1552 = vmatpush.bf16.msra.mxu0 0
        %1553 = vmatpush.bf16.msra.mxu0 0
        %1554 = vmatpush.bf16.msra.mxu0 0
        %1555 = vmatpush.bf16.msra.mxu0 0
        %1556 = vmatpush.bf16.msra.mxu0 %v1544
        %1557 = vmatpush.bf16.msra.mxu0 %v1543
        %1558 = vmatmul.bf16.gmra.mxu0 %v1548
        %v1559 = vpop.f32.mrf.mxu0
        %v1560 = vadd.f32 %v1534, %v1559
        %v1561 = vpop.f32.mrf.mxu0
        %v1562 = vadd.f32 %v1534, %v1561
        %1563 = vdwg.mxu0
        %v1564 = vmax.f32 %v1560, 0.0
        %v1565 = vmax.f32 %v1562, 0.0
        %v1566 = vpack.c.bf16 %v1565, %v1564
        %v1567 = vld [vmem:[%s379] sm:$0xf]
        %v1568 = vld [vmem:[%s379 + $0x4] sm:$0xf]
        %v1569 = vld [vmem:[%s379 + $0x8] sm:$0xf]
        %v1570 = vld [vmem:[%s379 + $0xc] sm:$0xf]
        %v1571 = vld [vmem:[%s379 + $0x10] sm:$0xf]
        %v1572 = vld [vmem:[%s379 + $0x14] sm:$0xf]
        %v1573 = vld [vmem:[%s379 + $0x18] sm:$0xf]
        %v1574 = vld [vmem:[%s379 + $0x1c] sm:$0xf]
        %v1575 = vperm.slane %v391, 3
        %v1584 = vunpack.c.l.b16 %v1567
        %v1585 = vunpack.c.l.b16 %v1568
        %v1586 = vunpack.c.l.b16 %v1569
        %v1587 = vunpack.c.l.b16 %v1570
        %v1588 = vunpack.c.l.b16 %v1571
        %v1589 = vunpack.c.l.b16 %v1572
        %v1590 = vunpack.c.l.b16 %v1573
        %v1591 = vunpack.c.l.b16 %v1574
        %v1592 = vpack.c.b16 %v1585, %v1584
        %v1593 = vpack.c.b16 %v1587, %v1586
        %v1594 = vpack.c.b16 %v1589, %v1588
        %v1595 = vpack.c.b16 %v1591, %v1590
        %vm1600 = vcmask 523264
        %v1602 = vsel %vm1600, %v1566, 0
        %1604 = vmatpush.bf16.msra.mxu0 0
        %1605 = vmatpush.bf16.msra.mxu0 0
        %1606 = vmatpush.bf16.msra.mxu0 0
        %1607 = vmatpush.bf16.msra.mxu0 0
        %1608 = vmatpush.bf16.msra.mxu0 %v1595
        %1609 = vmatpush.bf16.msra.mxu0 %v1594
        %1610 = vmatpush.bf16.msra.mxu0 %v1593
        %1611 = vmatpush.bf16.msra.mxu0 %v1592
        %1612 = vmatmul.bf16.gmra.mxu0 %v1602
        %v1613 = vpop.f32.mrf.mxu0
        %v1614 = vadd.f32 %v1575, %v1613
        %v1615 = vpop.f32.mrf.mxu0
        %v1616 = vadd.f32 %v1575, %v1615
        %1617 = vdwg.mxu0
        %v1618 = vadd.f32 %v1527, %v1614
        %v1619 = vadd.f32 %v1528, %v1616
        %v1620 = vsel %vm412, %v1618, 0.0
        %1621 = vadd.xlane.f32.xlu0 %v1620
        %v1622 = vpop.xlane.xlu0 %1621
        %v1623 = vsel %vm412, %v1619, 0.0
        %1624 = vadd.xlane.f32.xlu0 %v1623
        %v1625 = vpop.xlane.xlu0 %1624
        %v1626 = vmul.f32 %v1622, %v1484
        %v1627 = vmul.f32 %v1625, %v1484
        %v1628 = vsub.f32 %v1618, %v1626
        %v1629 = vsub.f32 %v1619, %v1627
        %v1630 = vmul.f32 %v1628, %v1628
        %v1631 = vmul.f32 %v1629, %v1629
        %v1632 = vsel %vm412, %v1630, 0.0
        %1633 = vadd.xlane.f32.xlu0 %v1632
        %v1634 = vpop.xlane.xlu0 %1633
        %v1635 = vsel %vm412, %v1631, 0.0
        %1636 = vadd.xlane.f32.xlu0 %v1635
        %v1637 = vpop.xlane.xlu0 %1636
        %v1638 = vmul.f32 %v1634, %v1484
        %v1639 = vmul.f32 %v1637, %v1484
        %v1640 = vadd.f32 %v1638, 1e-05
        %v1641 = vadd.f32 %v1639, 1e-05
        %v1642 = vrsqrt.pop %v1640
        %v1643 = vmul.f32 %v1642, %v1640
        %v1644 = vmul.f32 %v1643, %v1642
        %v1645 = vmul.f32 0.5, %v1644
        %v1646 = vsub.f32 1.5, %v1645
        %v1647 = vmul.f32 %v1642, %v1646
        %vm1648 = vweird.f32 %v1640
        %vm1649 = vweird.f32 %v1642
        %vm1650 = vmor %vm1648, %vm1649
        %v1651 = vsel %vm1650, %v1642, %v1647
        %v1652 = vrsqrt.pop %v1641
        %v1653 = vmul.f32 %v1652, %v1641
        %v1654 = vmul.f32 %v1653, %v1652
        %v1655 = vmul.f32 0.5, %v1654
        %v1656 = vsub.f32 1.5, %v1655
        %v1657 = vmul.f32 %v1652, %v1656
        %vm1658 = vweird.f32 %v1641
        %vm1659 = vweird.f32 %v1652
        %vm1660 = vmor %vm1658, %vm1659
        %v1661 = vsel %vm1660, %v1652, %v1657
        %v1662 = vmul.f32 %v1628, %v1651
        %v1663 = vmul.f32 %v1629, %v1661
        %v1664 = vperm.slane %v391, 6
        %v1665 = vmul.f32 %v1662, %v1664
        %v1666 = vmul.f32 %v1663, %v1664
        %v1667 = vperm.slane %v391, 7
        %v1668 = vadd.f32 %v1665, %v1667
        %v1669 = vadd.f32 %v1666, %v1667
        %p1670 = scmp.ne.s32.totalorder %s27, 1
        // Predicated region
        $region57: #{transformer_projector.1} parent=43 // pred_check
          %p1671 = pneg %p1670
        $region58: #{transformer_projector.1} parent=43 // pred_check_branch
          %1673 = sbr.rel (%p1671) target = $region60
        $region59: #{transformer_projector.1} parent=43 // pred_region
          %1674 = vst.msk [vmem:[#allocation2] sm:$0xff] %vm412, %v1668
          %1675 = vst.msk [vmem:[#allocation2 + $0x8] sm:$0xff] %vm412, %v1669
        $region60: #{transformer_projector.1} parent=43 // pred_fallthru
          _
        %p1676 = scmp.eq.s32.totalorder %s27, 1
        // Predicated region
        $region61: #{transformer_projector.1} parent=43 // pred_check
          %p1677 = pneg %p1676
        $region62: #{transformer_projector.1} parent=43 // pred_check_branch
          %1679 = sbr.rel (%p1677) target = $region64
        $region63: #{transformer_projector.1} parent=43 // pred_region
          %1680 = vst.msk [vmem:[#allocation9] sm:$0xff] %vm412, %v1668
          %1681 = vst.msk [vmem:[#allocation9 + $0x8] sm:$0xff] %vm412, %v1669
        $region64: #{transformer_projector.1} parent=43 // pred_fallthru
          _
        // Predicated region
        $region65: #{transformer_projector.1} parent=43 // pred_check
          %p1682 = pneg %p208
        $region66: #{transformer_projector.1} parent=43 // pred_check_branch
          %1684 = sbr.rel (%p1682) target = $region68
        $region67: #{transformer_projector.1} parent=43 // pred_region
          %s1685 = smul.u32 2, %s26
          %1687 = vsyncadd [#allocation6], 0
          %s1688 = smul.addr %s1685, 8
          %s1689 = scalar_lea.hbm %s6, %s1688
          %s1690 = sshll.u32 [#allocation9], 4
          %s1691 = int_to_ptr.vmem [resolvable:$true] %s1690
          %s1692 = sshll.u32 %s1689, 4
          %s1693 = int_to_ptr.hbm [resolvable:$true] %s1692
          %1698 = dma.vmem_to_hbm [thread:$0]  %s1691, 256, %s1693, [#allocation6], 128, 128, 8
        $region68: #{transformer_projector.1} parent=43 // pred_fallthru
          _
        // Predicated region
        $region69: #{transformer_projector.1} parent=43 // pred_check
          %p1699 = pneg %p208
        $region70: #{transformer_projector.1} parent=43 // pred_check_branch
          %1701 = sbr.rel (%p1699) target = $region72
        $region71: #{transformer_projector.1} parent=43 // pred_region
          %1703 = dma.done [#allocation6], 256
        $region72: #{transformer_projector.1} parent=43 // pred_fallthru
          _
      $region44: #{transformer_projector.1} parent=5 // pred_fallthru
        _
      %p1704 = scmp.le.s32.totalorder 2, %s17
      // Predicated region
      $region73: #{transformer_projector.1} parent=5 // pred_check
        %p1705 = pneg %p1704
      $region74: #{transformer_projector.1} parent=5 // pred_check_branch
        %1707 = sbr.rel (%p1705) target = $region76
      $region75: #{transformer_projector.1} parent=5 // pred_region
        %s1708 = ssub.s32 %s17, 2
      $region76: #{transformer_projector.1} parent=5 // pred_fallthru
        _
    $region6: #{transformer_projector.1} parent=1 // loop_footer
      %s21 = sadd.s32 1, %s17
    $region7: #{transformer_projector.1} parent=1 // loop_footer_branch
      %16 = sbr.rel target = $region3
    $region8: #{transformer_projector.1} parent=1 // loop_exit
      _
    %1709 = vsyncpa [#allocation5], 1
    %s1710 = scalar_lea.sflag [#allocation5], 1
    %1711 = vsyncpa %s1710, 1
    %1712 = vsyncpa [#allocation8], 1
    %s1713 = scalar_lea.sflag [#allocation8], 1
    %1714 = vsyncpa %s1713, 1
    %1715 = vsyncpa [#allocation6], 1
    %s1716 = scalar_lea.sflag [#allocation6], 1
    %1717 = vsyncpa %s1716, 1

</llo_original>
